<compile_context>
chip_gen: v6e
topology: v6e:2x2x1
jax: 0.10.0
libtpu: 0.0.40
codegen_flags: <defaults>
</compile_context>

<pallas_src>
import functools

import jax
import jax.numpy as jnp
from jax.experimental import pallas as pl
from jax.experimental.pallas import tpu as pltpu


# -----------------------------------------------------------------------------
# Kernel: one (row-tile, timestep) grid point runs the full L-layer cell stack.
#
# Refs (in order):
#   x_ref           : [1, TM, C_in0]   input rows for timestep t
#   per layer l:
#     wx_ref[l]     : [C_l, 3U] bf16   input->gates   (gate order r, z, n)
#     wh_ref[l]     : [U,   3U] bf16   hidden->gates
#     bx_ref[l]     : [1,   3U] f32    r,z part already has bh_rz folded in
#     bhn_ref[l]    : [1,   U ] f32    hidden n-gate bias (scaled by r)
#   o_ref           : [L, TM, U]       stacked hidden states
#   h_scratch       : [L, TM, U] f32   only when output dtype != f32
# -----------------------------------------------------------------------------
def _encoder_kernel(L, state_in_output, x_ref, *refs):
    n_w = 4 * L
    w_refs = refs[:n_w]
    o_ref = refs[n_w]
    # When the output is f32 the hidden state lives directly in o_ref
    # (constant block index over t keeps it VMEM-resident for the whole grid).
    h_ref = o_ref if state_in_output else refs[n_w + 1]

    t = pl.program_id(1)

    @pl.when(t == 0)
    def _():
        # hidden_state is None on the first call -> zeros
        h_ref[...] = jnp.zeros_like(h_ref)

    out = x_ref[0].astype(jnp.float32)  # [TM, C_in0]

    for l in range(L):
        wx_ref, wh_ref, bx_ref, bhn_ref = w_refs[4 * l : 4 * l + 4]
        h_prev = h_ref[l].astype(jnp.float32)  # [TM, U]
        U = h_prev.shape[-1]

        # Two wide matmuls per layer: bf16 operands on the MXU, f32 accumulate.
        gx = jnp.dot(out.astype(jnp.bfloat16), wx_ref[...],
                     preferred_element_type=jnp.float32) + bx_ref[...]
        gh = jnp.dot(h_prev.astype(jnp.bfloat16), wh_ref[...],
                     preferred_element_type=jnp.float32)

        # Lane-aligned gate slices (U is a multiple of 128); gate math in f32.
        rz = jax.nn.sigmoid(gx[:, : 2 * U] + gh[:, : 2 * U])
        r = rz[:, :U]
        z = rz[:, U:]
        n = jnp.tanh(gx[:, 2 * U :] + r * (gh[:, 2 * U :] + bhn_ref[...]))

        h_new = (1.0 - z) * n + z * h_prev
        h_ref[l] = h_new.astype(h_ref.dtype)
        out = h_new

    if not state_in_output:
        @pl.when(t == pl.num_programs(1) - 1)
        def _():
            o_ref[...] = h_ref[...].astype(o_ref.dtype)


def _choose_tile_m(M, max_tile_m):
    """Largest row tile <= max_tile_m that divides M and is a multiple of 8."""
    tm = min(M, max_tile_m)
    tm -= tm % 8
    while tm > 8 and M % tm != 0:
        tm -= 8
    assert tm >= 8 and M % tm == 0
    return tm


# -----------------------------------------------------------------------------
# Wrapper: one pallas_call for the whole [T, B, N, C] sequence.
# -----------------------------------------------------------------------------
def encoder_forward(inputs, params, *, max_tile_m=256):
    """
    inputs: [T, B, N, C]  (time, batch, node, channel)
    params: list (one per layer) of dicts with
            wx [C_in, 3U], wh [U, 3U], bx [1, 3U], bh [1, 3U]   (gate order r,z,n)
    returns: encoder hidden state [L, B, N, U]
    """
    T, B, N, C = inputs.shape
    L = len(params)
    U = params[0]["wh"].shape[0]
    M = B * N
    assert U % 128 == 0, "rnn_units must be a multiple of 128 (lane-dense gates)"
    assert M % 8 == 0, "B*N must be a multiple of 8 (sublane alignment)"
    # NOTE: on v7x (64 MiB VMEM) prefer roughly half the max_tile_m of v5e/v6e.
    TM = _choose_tile_m(M, max_tile_m)

    x = inputs.reshape(T, M, C)
    state_in_output = inputs.dtype == jnp.float32

    in_specs = [pl.BlockSpec((1, TM, C), lambda m, t: (t, m, 0))]
    weight_args = []
    for p in params:
        wx = p["wx"].astype(jnp.bfloat16)          # bf16 MXU operands
        wh = p["wh"].astype(jnp.bfloat16)
        bx = p["bx"].astype(jnp.float32)
        bh = p["bh"].astype(jnp.float32)
        # Pre-sum the r,z biases host-side; keep bh_n separate (scaled by r).
        bx_comb = jnp.concatenate(
            [bx[:, : 2 * U] + bh[:, : 2 * U], bx[:, 2 * U :]], axis=1)
        bh_n = bh[:, 2 * U :]
        for w in (wx, wh, bx_comb, bh_n):
            weight_args.append(w)
            # Constant index map -> DMA'd once, VMEM-resident for the grid.
            in_specs.append(pl.BlockSpec(w.shape, lambda m, t, nd=w.ndim: (0,) * nd))

    scratch_shapes = () if state_in_output else (pltpu.VMEM((L, TM, U), jnp.float32),)

    out = pl.pallas_call(
        functools.partial(_encoder_kernel, L, state_in_output),
        out_shape=jax.ShapeDtypeStruct((L, M, U), inputs.dtype),
        grid_spec=pltpu.PrefetchScalarGridSpec(
            num_scalar_prefetch=0,
            grid=(M // TM, T),            # (parallel row tiles, sequential time)
            in_specs=in_specs,
            out_specs=pl.BlockSpec((L, TM, U), lambda m, t: (0, m, 0)),
            scratch_shapes=scratch_shapes,
        ),
        compiler_params=pltpu.CompilerParams(
            dimension_semantics=("parallel", "arbitrary"),
            vmem_limit_bytes=48 * 1024 * 1024,
        ),
    )(x, *weight_args)

    return out.reshape(L, B, N, U)


# -----------------------------------------------------------------------------
# Deterministic parameters (gates pre-concatenated along the output dim).
# -----------------------------------------------------------------------------
def make_params(key, layer_num, in_dim, rnn_units, dtype=jnp.float32):
    params = []
    for l in range(layer_num):
        c_in = in_dim if l == 0 else rnn_units
        key, k1, k2, k3, k4 = jax.random.split(key, 5)
        scale = 1.0 / jnp.sqrt(jnp.float32(rnn_units))
        params.append(
            dict(
                wx=(jax.random.normal(k1, (c_in, 3 * rnn_units)) * scale).astype(dtype),
                wh=(jax.random.normal(k2, (rnn_units, 3 * rnn_units)) * scale).astype(dtype),
                bx=(jax.random.normal(k3, (1, 3 * rnn_units)) * scale).astype(dtype),
                bh=(jax.random.normal(k4, (1, 3 * rnn_units)) * scale).astype(dtype),
            )
        )
    return params


# -----------------------------------------------------------------------------
# Pure-JAX reference (same math: bf16 matmul operands, f32 everything else).
# -----------------------------------------------------------------------------
def encoder_forward_ref(inputs, params):
    T, B, N, C = inputs.shape
    L = len(params)
    U = params[0]["wh"].shape[0]
    M = B * N
    x = inputs.reshape(T, M, C).astype(jnp.float32)

    h = [jnp.zeros((M, U), jnp.float32) for _ in range(L)]
    for t in range(T):
        out = x[t]
        for l in range(L):
            p = params[l]
            wx = p["wx"].astype(jnp.bfloat16)
            wh = p["wh"].astype(jnp.bfloat16)
            bx = p["bx"].astype(jnp.float32)
            bh = p["bh"].astype(jnp.float32)
            gx = jnp.dot(out.astype(jnp.bfloat16), wx,
                         preferred_element_type=jnp.float32) + bx
            gh = jnp.dot(h[l].astype(jnp.bfloat16), wh,
                         preferred_element_type=jnp.float32) + bh
            r = jax.nn.sigmoid(gx[:, :U] + gh[:, :U])
            z = jax.nn.sigmoid(gx[:, U:2 * U] + gh[:, U:2 * U])
            n = jnp.tanh(gx[:, 2 * U:] + r * gh[:, 2 * U:])
            h[l] = (1.0 - z) * n + z * h[l]
            out = h[l]
    return jnp.stack(h).reshape(L, B, N, U).astype(inputs.dtype)


if __name__ == "__main__":
    # Small shapes consistent with the module's forward: inputs [T, B, N, C].
    # rnn_units = 128 keeps every slice/store lane-dense; B*N = 128 gives a
    # full 128-row MXU tile so the benchmark shape is not degenerate.
    seq_len, batch, node_num, in_dim = 8, 2, 64, 32
    rnn_units, layer_num = 128, 2

    key = jax.random.PRNGKey(0)
    key, k_in = jax.random.split(key)
    inputs = jax.random.normal(
        k_in, (seq_len, batch, node_num, in_dim), dtype=jnp.float32
    )
    params = make_params(key, layer_num, in_dim, rnn_units)

    fwd = jax.jit(functools.partial(encoder_forward, params=params))
    encoder_hidden_state = fwd(inputs)
    jax.block_until_ready(encoder_hidden_state)

    assert encoder_hidden_state.shape == (layer_num, batch, node_num, rnn_units)
    assert bool(jnp.all(jnp.isfinite(encoder_hidden_state)))

    ref = encoder_forward_ref(inputs, params)
    assert bool(
        jnp.allclose(encoder_hidden_state, ref, rtol=2e-2, atol=2e-2)
    ), "mismatch vs pure-JAX reference"

    print("KERNEL_OK")
</pallas_src>

<mosaic_0001>
module attributes {stable_mosaic.version = 11 : i64} {
  func.func @_encoder_kernel(%arg0: i32, %arg1: i32, %arg2: memref<1x128x32xf32, #tpu.memory_space<vmem>>, %arg3: memref<32x384xbf16, #tpu.memory_space<vmem>>, %arg4: memref<128x384xbf16, #tpu.memory_space<vmem>>, %arg5: memref<1x384xf32, #tpu.memory_space<vmem>>, %arg6: memref<1x128xf32, #tpu.memory_space<vmem>>, %arg7: memref<128x384xbf16, #tpu.memory_space<vmem>>, %arg8: memref<128x384xbf16, #tpu.memory_space<vmem>>, %arg9: memref<1x384xf32, #tpu.memory_space<vmem>>, %arg10: memref<1x128xf32, #tpu.memory_space<vmem>>, %arg11: memref<2x128x128xf32, #tpu.memory_space<vmem>>) attributes {dimension_semantics = [#tpu.dimension_semantics<parallel>, #tpu.dimension_semantics<arbitrary>], iteration_bounds = array<i64: 1, 8>, scalar_prefetch = 0 : i64, scratch_operands = 0 : i64, tpu.core_type = #tpu.core_type<tc>, window_params = [{transform_indices = @transform_0, window_bounds = array<i64: 1, 128, 32>}, {pipeline_mode = #tpu.pipeline_mode<synchronous>, transform_indices = @transform_1, window_bounds = array<i64: 32, 384>}, {pipeline_mode = #tpu.pipeline_mode<synchronous>, transform_indices = @transform_2, window_bounds = array<i64: 128, 384>}, {pipeline_mode = #tpu.pipeline_mode<synchronous>, transform_indices = @transform_3, window_bounds = array<i64: 1, 384>}, {pipeline_mode = #tpu.pipeline_mode<synchronous>, transform_indices = @transform_4, window_bounds = array<i64: 1, 128>}, {pipeline_mode = #tpu.pipeline_mode<synchronous>, transform_indices = @transform_5, window_bounds = array<i64: 128, 384>}, {pipeline_mode = #tpu.pipeline_mode<synchronous>, transform_indices = @transform_6, window_bounds = array<i64: 128, 384>}, {pipeline_mode = #tpu.pipeline_mode<synchronous>, transform_indices = @transform_7, window_bounds = array<i64: 1, 384>}, {pipeline_mode = #tpu.pipeline_mode<synchronous>, transform_indices = @transform_8, window_bounds = array<i64: 1, 128>}, {transform_indices = @transform_9, window_bounds = array<i64: 2, 128, 128>}]} {
    %c0_i32 = arith.constant 0 : i32
    %0 = arith.cmpi eq, %arg1, %c0_i32 : i32
    %1 = arith.extui %0 : i1 to i32
    %c0_i32_0 = arith.constant 0 : i32
    %2 = arith.cmpi ne, %1, %c0_i32_0 : i32
    scf.if %2 {
      %cst_37 = arith.constant 0.000000e+00 : f32
      %79 = vector.broadcast %cst_37 : f32 to vector<2x128x128xf32>
      %c0_38 = arith.constant 0 : index
      %c0_39 = arith.constant 0 : index
      %c0_40 = arith.constant 0 : index
      %80 = vector.load %arg11[%c0_38, %c0_39, %c0_40] : memref<2x128x128xf32, #tpu.memory_space<vmem>>, vector<2x128x128xf32>
      tpu.vector_store %arg11[%c0_38, %c0_39, %c0_40], %79 {strides = array<i32>} : memref<2x128x128xf32, #tpu.memory_space<vmem>>, vector<2x128x128xf32>,
    } else {
    }
    %c0 = arith.constant 0 : index
    %c0_1 = arith.constant 0 : index
    %c0_2 = arith.constant 0 : index
    %3 = vector.load %arg2[%c0, %c0_1, %c0_2] : memref<1x128x32xf32, #tpu.memory_space<vmem>>, vector<1x128x32xf32>
    %4 = vector.shape_cast %3 : vector<1x128x32xf32> to vector<128x32xf32>
    %c0_3 = arith.constant 0 : index
    %c0_4 = arith.constant 0 : index
    %c0_5 = arith.constant 0 : index
    %5 = vector.load %arg11[%c0_3, %c0_4, %c0_5] : memref<2x128x128xf32, #tpu.memory_space<vmem>>, vector<1x128x128xf32>
    %6 = vector.shape_cast %5 : vector<1x128x128xf32> to vector<128x128xf32>
    %7 = arith.truncf %4 : vector<128x32xf32> to vector<128x32xbf16>
    %c0_6 = arith.constant 0 : index
    %c0_7 = arith.constant 0 : index
    %8 = vector.load %arg3[%c0_6, %c0_7] : memref<32x384xbf16, #tpu.memory_space<vmem>>, vector<32x384xbf16>
    %cst = arith.constant dense<0.000000e+00> : vector<128x384xf32>
    %9 = tpu.matmul %7, %8, %cst {dimension_numbers = #tpu.dot_dimension_numbers<[1], [0], [0], [1], [0, 0, 1, 1], [], []>} : vector<128x32xbf16>, vector<32x384xbf16>, vector<128x384xf32> -> vector<128x384xf32>
    %c0_8 = arith.constant 0 : index
    %c0_9 = arith.constant 0 : index
    %10 = vector.load %arg5[%c0_8, %c0_9] : memref<1x384xf32, #tpu.memory_space<vmem>>, vector<1x384xf32>
    %11 = vector.broadcast %10 : vector<1x384xf32> to vector<128x384xf32>
    %12 = arith.addf %9, %11 : vector<128x384xf32>
    %13 = arith.truncf %6 : vector<128x128xf32> to vector<128x128xbf16>
    %c0_10 = arith.constant 0 : index
    %c0_11 = arith.constant 0 : index
    %14 = vector.load %arg4[%c0_10, %c0_11] : memref<128x384xbf16, #tpu.memory_space<vmem>>, vector<128x384xbf16>
    %cst_12 = arith.constant dense<0.000000e+00> : vector<128x384xf32>
    %15 = tpu.matmul %13, %14, %cst_12 {dimension_numbers = #tpu.dot_dimension_numbers<[1], [0], [0], [1], [0, 0, 1, 1], [], []>} : vector<128x128xbf16>, vector<128x384xbf16>, vector<128x384xf32> -> vector<128x384xf32>
    %16 = vector.extract_strided_slice %12 {offsets = [0, 0], sizes = [128, 256], strides = [1, 1]} : vector<128x384xf32> to vector<128x256xf32>
    %17 = vector.extract_strided_slice %15 {offsets = [0, 0], sizes = [128, 256], strides = [1, 1]} : vector<128x384xf32> to vector<128x256xf32>
    %18 = arith.addf %16, %17 : vector<128x256xf32>
    %19 = arith.negf %18 : vector<128x256xf32>
    %20 = math.exp %19 : vector<128x256xf32>
    %cst_13 = arith.constant 1.000000e+00 : f32
    %21 = vector.broadcast %cst_13 : f32 to vector<128x256xf32>
    %22 = arith.addf %21, %20 : vector<128x256xf32>
    %23 = arith.divf %21, %22 : vector<128x256xf32>
    %24 = vector.extract_strided_slice %23 {offsets = [0, 0], sizes = [128, 128], strides = [1, 1]} : vector<128x256xf32> to vector<128x128xf32>
    %25 = vector.extract_strided_slice %23 {offsets = [0, 128], sizes = [128, 128], strides = [1, 1]} : vector<128x256xf32> to vector<128x128xf32>
    %26 = vector.extract_strided_slice %12 {offsets = [0, 256], sizes = [128, 128], strides = [1, 1]} : vector<128x384xf32> to vector<128x128xf32>
    %27 = vector.extract_strided_slice %15 {offsets = [0, 256], sizes = [128, 128], strides = [1, 1]} : vector<128x384xf32> to vector<128x128xf32>
    %c0_14 = arith.constant 0 : index
    %c0_15 = arith.constant 0 : index
    %28 = vector.load %arg6[%c0_14, %c0_15] : memref<1x128xf32, #tpu.memory_space<vmem>>, vector<1x128xf32>
    %29 = vector.broadcast %28 : vector<1x128xf32> to vector<128x128xf32>
    %30 = arith.addf %27, %29 : vector<128x128xf32>
    %31 = arith.mulf %24, %30 : vector<128x128xf32>
    %32 = arith.addf %26, %31 : vector<128x128xf32>
    %33 = math.tanh %32 : vector<128x128xf32>
    %cst_16 = arith.constant 1.000000e+00 : f32
    %34 = vector.broadcast %cst_16 : f32 to vector<128x128xf32>
    %35 = arith.subf %34, %25 : vector<128x128xf32>
    %36 = arith.mulf %35, %33 : vector<128x128xf32>
    %37 = arith.mulf %25, %6 : vector<128x128xf32>
    %38 = arith.addf %36, %37 : vector<128x128xf32>
    %c0_17 = arith.constant 0 : index
    %c0_18 = arith.constant 0 : index
    %c0_19 = arith.constant 0 : index
    %39 = vector.load %arg11[%c0_17, %c0_18, %c0_19] : memref<2x128x128xf32, #tpu.memory_space<vmem>>, vector<1x128x128xf32>
    %40 = vector.shape_cast %39 : vector<1x128x128xf32> to vector<128x128xf32>
    %41 = vector.shape_cast %38 : vector<128x128xf32> to vector<1x128x128xf32>
    tpu.vector_store %arg11[%c0_17, %c0_18, %c0_19], %41 {strides = array<i32>} : memref<2x128x128xf32, #tpu.memory_space<vmem>>, vector<1x128x128xf32>,
    %c1 = arith.constant 1 : index
    %c0_20 = arith.constant 0 : index
    %c0_21 = arith.constant 0 : index
    %42 = vector.load %arg11[%c1, %c0_20, %c0_21] : memref<2x128x128xf32, #tpu.memory_space<vmem>>, vector<1x128x128xf32>
    %43 = vector.shape_cast %42 : vector<1x128x128xf32> to vector<128x128xf32>
    %44 = arith.truncf %38 : vector<128x128xf32> to vector<128x128xbf16>
    %c0_22 = arith.constant 0 : index
    %c0_23 = arith.constant 0 : index
    %45 = vector.load %arg7[%c0_22, %c0_23] : memref<128x384xbf16, #tpu.memory_space<vmem>>, vector<128x384xbf16>
    %cst_24 = arith.constant dense<0.000000e+00> : vector<128x384xf32>
    %46 = tpu.matmul %44, %45, %cst_24 {dimension_numbers = #tpu.dot_dimension_numbers<[1], [0], [0], [1], [0, 0, 1, 1], [], []>} : vector<128x128xbf16>, vector<128x384xbf16>, vector<128x384xf32> -> vector<128x384xf32>
    %c0_25 = arith.constant 0 : index
    %c0_26 = arith.constant 0 : index
    %47 = vector.load %arg9[%c0_25, %c0_26] : memref<1x384xf32, #tpu.memory_space<vmem>>, vector<1x384xf32>
    %48 = vector.broadcast %47 : vector<1x384xf32> to vector<128x384xf32>
    %49 = arith.addf %46, %48 : vector<128x384xf32>
    %50 = arith.truncf %43 : vector<128x128xf32> to vector<128x128xbf16>
    %c0_27 = arith.constant 0 : index
    %c0_28 = arith.constant 0 : index
    %51 = vector.load %arg8[%c0_27, %c0_28] : memref<128x384xbf16, #tpu.memory_space<vmem>>, vector<128x384xbf16>
    %cst_29 = arith.constant dense<0.000000e+00> : vector<128x384xf32>
    %52 = tpu.matmul %50, %51, %cst_29 {dimension_numbers = #tpu.dot_dimension_numbers<[1], [0], [0], [1], [0, 0, 1, 1], [], []>} : vector<128x128xbf16>, vector<128x384xbf16>, vector<128x384xf32> -> vector<128x384xf32>
    %53 = vector.extract_strided_slice %49 {offsets = [0, 0], sizes = [128, 256], strides = [1, 1]} : vector<128x384xf32> to vector<128x256xf32>
    %54 = vector.extract_strided_slice %52 {offsets = [0, 0], sizes = [128, 256], strides = [1, 1]} : vector<128x384xf32> to vector<128x256xf32>
    %55 = arith.addf %53, %54 : vector<128x256xf32>
    %56 = arith.negf %55 : vector<128x256xf32>
    %57 = math.exp %56 : vector<128x256xf32>
    %cst_30 = arith.constant 1.000000e+00 : f32
    %58 = vector.broadcast %cst_30 : f32 to vector<128x256xf32>
    %59 = arith.addf %58, %57 : vector<128x256xf32>
    %60 = arith.divf %58, %59 : vector<128x256xf32>
    %61 = vector.extract_strided_slice %60 {offsets = [0, 0], sizes = [128, 128], strides = [1, 1]} : vector<128x256xf32> to vector<128x128xf32>
    %62 = vector.extract_strided_slice %60 {offsets = [0, 128], sizes = [128, 128], strides = [1, 1]} : vector<128x256xf32> to vector<128x128xf32>
    %63 = vector.extract_strided_slice %49 {offsets = [0, 256], sizes = [128, 128], strides = [1, 1]} : vector<128x384xf32> to vector<128x128xf32>
    %64 = vector.extract_strided_slice %52 {offsets = [0, 256], sizes = [128, 128], strides = [1, 1]} : vector<128x384xf32> to vector<128x128xf32>
    %c0_31 = arith.constant 0 : index
    %c0_32 = arith.constant 0 : index
    %65 = vector.load %arg10[%c0_31, %c0_32] : memref<1x128xf32, #tpu.memory_space<vmem>>, vector<1x128xf32>
    %66 = vector.broadcast %65 : vector<1x128xf32> to vector<128x128xf32>
    %67 = arith.addf %64, %66 : vector<128x128xf32>
    %68 = arith.mulf %61, %67 : vector<128x128xf32>
    %69 = arith.addf %63, %68 : vector<128x128xf32>
    %70 = math.tanh %69 : vector<128x128xf32>
    %cst_33 = arith.constant 1.000000e+00 : f32
    %71 = vector.broadcast %cst_33 : f32 to vector<128x128xf32>
    %72 = arith.subf %71, %62 : vector<128x128xf32>
    %73 = arith.mulf %72, %70 : vector<128x128xf32>
    %74 = arith.mulf %62, %43 : vector<128x128xf32>
    %75 = arith.addf %73, %74 : vector<128x128xf32>
    %c1_34 = arith.constant 1 : index
    %c0_35 = arith.constant 0 : index
    %c0_36 = arith.constant 0 : index
    %76 = vector.load %arg11[%c1_34, %c0_35, %c0_36] : memref<2x128x128xf32, #tpu.memory_space<vmem>>, vector<1x128x128xf32>
    %77 = vector.shape_cast %76 : vector<1x128x128xf32> to vector<128x128xf32>
    %78 = vector.shape_cast %75 : vector<128x128xf32> to vector<1x128x128xf32>
    tpu.vector_store %arg11[%c1_34, %c0_35, %c0_36], %78 {strides = array<i32>} : memref<2x128x128xf32, #tpu.memory_space<vmem>>, vector<1x128x128xf32>,
    return
  }
  func.func @transform_0(%arg0: i32, %arg1: i32) -> (i32, i32, i32) {
    %c0_i32 = arith.constant 0 : i32
    %c0_i32_0 = arith.constant 0 : i32
    return %arg1, %arg0, %c0_i32 : i32, i32, i32
  }
  func.func @transform_1(%arg0: i32, %arg1: i32) -> (i32, i32) {
    %c0_i32 = arith.constant 0 : i32
    %c0_i32_0 = arith.constant 0 : i32
    %c0_i32_1 = arith.constant 0 : i32
    return %c0_i32, %c0_i32_0 : i32, i32
  }
  func.func @transform_2(%arg0: i32, %arg1: i32) -> (i32, i32) {
    %c0_i32 = arith.constant 0 : i32
    %c0_i32_0 = arith.constant 0 : i32
    %c0_i32_1 = arith.constant 0 : i32
    return %c0_i32, %c0_i32_0 : i32, i32
  }
  func.func @transform_3(%arg0: i32, %arg1: i32) -> (i32, i32) {
    %c0_i32 = arith.constant 0 : i32
    %c0_i32_0 = arith.constant 0 : i32
    %c0_i32_1 = arith.constant 0 : i32
    return %c0_i32, %c0_i32_0 : i32, i32
  }
  func.func @transform_4(%arg0: i32, %arg1: i32) -> (i32, i32) {
    %c0_i32 = arith.constant 0 : i32
    %c0_i32_0 = arith.constant 0 : i32
    %c0_i32_1 = arith.constant 0 : i32
    return %c0_i32, %c0_i32_0 : i32, i32
  }
  func.func @transform_5(%arg0: i32, %arg1: i32) -> (i32, i32) {
    %c0_i32 = arith.constant 0 : i32
    %c0_i32_0 = arith.constant 0 : i32
    %c0_i32_1 = arith.constant 0 : i32
    return %c0_i32, %c0_i32_0 : i32, i32
  }
  func.func @transform_6(%arg0: i32, %arg1: i32) -> (i32, i32) {
    %c0_i32 = arith.constant 0 : i32
    %c0_i32_0 = arith.constant 0 : i32
    %c0_i32_1 = arith.constant 0 : i32
    return %c0_i32, %c0_i32_0 : i32, i32
  }
  func.func @transform_7(%arg0: i32, %arg1: i32) -> (i32, i32) {
    %c0_i32 = arith.constant 0 : i32
    %c0_i32_0 = arith.constant 0 : i32
    %c0_i32_1 = arith.constant 0 : i32
    return %c0_i32, %c0_i32_0 : i32, i32
  }
  func.func @transform_8(%arg0: i32, %arg1: i32) -> (i32, i32) {
    %c0_i32 = arith.constant 0 : i32
    %c0_i32_0 = arith.constant 0 : i32
    %c0_i32_1 = arith.constant 0 : i32
    return %c0_i32, %c0_i32_0 : i32, i32
  }
  func.func @transform_9(%arg0: i32, %arg1: i32) -> (i32, i32, i32) {
    %c0_i32 = arith.constant 0 : i32
    %c0_i32_0 = arith.constant 0 : i32
    %c0_i32_1 = arith.constant 0 : i32
    return %c0_i32, %arg0, %c0_i32_0 : i32, i32, i32
  }
}

</mosaic_0001>

<llo_original>
// kernel: encoder_forward.1
$region0: #{encoder_forward.1}
  #allocation0 [shape = 'u32[]', space=smem, size = 0x4, offset = 0x4, fixed_abs, tag = 'smem constant byte address 0x4 - core index']
  #allocation1 [shape = 'u32[144,128]{1,0:T(1,128)}', space=vmem, size = 0x12000, scoped, tag = 'internal scratch']
  %s0 = inlined_call_operand.vmem [shape: f32[8,128,32], index: 0, kind: input, shape index: {}]
  %s1 = inlined_call_operand.vmem [shape: bf16[32,384], index: 1, kind: input, shape index: {}]
  %s2 = inlined_call_operand.vmem [shape: bf16[128,384], index: 2, kind: input, shape index: {}]
  %s3 = inlined_call_operand.vmem [shape: f32[1,384], index: 3, kind: input, shape index: {}]
  %s4 = inlined_call_operand.vmem [shape: f32[1,128], index: 4, kind: input, shape index: {}]
  %s5 = inlined_call_operand.vmem [shape: bf16[128,384], index: 5, kind: input, shape index: {}]
  %s6 = inlined_call_operand.vmem [shape: bf16[128,384], index: 6, kind: input, shape index: {}]
  %s7 = inlined_call_operand.vmem [shape: f32[1,384], index: 7, kind: input, shape index: {}]
  %s8 = inlined_call_operand.vmem [shape: f32[1,128], index: 8, kind: input, shape index: {}]
  %s9 = inlined_call_operand.hbm [shape: f32[2,128,128], index: 9, kind: output, shape index: {}]
  %s10 = sld [smem:[#allocation0]]
  $region73: #{encoder_forward.1} parent=0
    _
  %s12 = ssub.s32 1, %s10
  %s13 = scalar_select 0, %s12, %s10
  $region1: #{encoder_forward.1} parent=0
    #allocation2 [shape = 'u8[131072]{0}', space=vmem, size = 0x20000, scoped, tag = 'output window, operand 0, single buffered']
    #allocation3 [shape = 's32[2]{0}', space=sflag, size = 0x8, scoped, tag = 'scoped memory for encoder_forward.1']
    %14 = vsyncpa [#allocation3], 0
    loop: start=0, step=1, limit=10
    $region2: #{encoder_forward.1} parent=1 // loop_pre_header
      _
    $region3: #{encoder_forward.1} parent=1 // loop_header
      %s16 = sphi 0, %s20
      %p17 = scmp.ge.s32.totalorder %s16, 10
      %s23 = sphi 0, %s35
      %s24 = sphi 0, %s31
      %s25 = sphi 0, %s23
      %s26 = sphi 0, %s24
      %s27 = sphi 0, %s25
      %s28 = sphi 0, %s26
      %s40 = sphi 0, %s42
      %s43 = sphi 0, %s40
      %s44 = sphi 0, %s43
      %s60 = sphi 0, %s44
      %s64 = sphi 0, %s64
      %s66 = sphi 0, %s64
      %s67 = sphi 0, %s66
      %s81 = sphi 0, %s67
      %s85 = sphi 0, %s85
      %s87 = sphi 0, %s85
      %s88 = sphi 0, %s87
      %s102 = sphi 0, %s88
      %s106 = sphi 0, %s106
      %s108 = sphi 0, %s106
      %s109 = sphi 0, %s108
      %s123 = sphi 0, %s109
      %s127 = sphi 0, %s127
      %s129 = sphi 0, %s127
      %s130 = sphi 0, %s129
      %s144 = sphi 0, %s130
      %s148 = sphi 0, %s148
      %s150 = sphi 0, %s148
      %s151 = sphi 0, %s150
      %s165 = sphi 0, %s151
      %s169 = sphi 0, %s169
      %s171 = sphi 0, %s169
      %s172 = sphi 0, %s171
      %s186 = sphi 0, %s172
      %s190 = sphi 0, %s190
      %s192 = sphi 0, %s190
      %s193 = sphi 0, %s192
      %s207 = sphi 0, %s193
      %s211 = sphi 0, %s211
      %s213 = sphi 0, %s211
      %s214 = sphi 0, %s213
      %s228 = sphi 0, %s214
      %s234 = sphi 0, %s236
      %s237 = sphi 0, %s234
      %s238 = sphi 0, %s237
      %s254 = sphi 0, %s238
    $region4: #{encoder_forward.1} parent=1 // loop_header_branch
      %19 = sbr.rel (%p17) target = $region8
    $region5: #{encoder_forward.1} parent=1 // loop_body
      %s21 = ssub.s32 %s16, 1
      %s22 = ssub.s32 %s16, 2
      %s29 = sadd.s32 1, %s24
      %p30 = scmp.ge.s32.totalorder %s29, 8
      %s31 = scalar_select %p30, 0, %s29
      %s32 = sadd.s32 1, %s23
      %s33 = scalar_select %p30, %s32, %s23
      %p34 = scmp.ge.s32.totalorder %s33, 1
      %s35 = scalar_select %p34, 0, %s33
      %s36 = ssub.s32 %s24, %s31
      %s37 = ssub.s32 %s23, %s35
      %s38 = sor.u32 %s36, %s37
      %p39 = scmp.eq.s32.totalorder %s38, 0
      %s41 = sadd.s32 %s40, 1
      %s42 = scalar_select %p39, %s40, %s41
      %p45 = pneg %p39
      %p46 = scmp.eq.s32.totalorder %s16, 7
      %p47 = por %p45, %p46
      %p48 = scmp.ne.s32.totalorder %s40, %s43
      %p49 = scmp.eq.s32.totalorder %s16, 0
      %p50 = por %p48, %p49
      %p51 = scmp.ne.s32.totalorder %s40, %s43
      %p52 = scmp.eq.s32.totalorder %s21, 7
      %p53 = por %p51, %p52
      %p54 = scmp.ne.s32.totalorder %s43, %s44
      %p55 = scmp.eq.s32.totalorder %s21, 0
      %p56 = por %p54, %p55
      %p57 = scmp.ne.s32.totalorder %s43, %s44
      %p58 = scmp.eq.s32.totalorder %s22, 7
      %p59 = por %p57, %p58
      %p61 = scmp.ne.s32.totalorder %s44, %s60
      %p62 = scmp.eq.s32.totalorder %s22, 0
      %p63 = por %p61, %p62
      %s65 = sadd.s32 %s64, 1
      %p68 = scmp.eq.s32.totalorder %s16, 7
      %p69 = scmp.ne.s32.totalorder %s64, %s66
      %p70 = scmp.eq.s32.totalorder %s16, 0
      %p71 = por %p69, %p70
      %p72 = scmp.ne.s32.totalorder %s64, %s66
      %p73 = scmp.eq.s32.totalorder %s21, 7
      %p74 = por %p72, %p73
      %p75 = scmp.ne.s32.totalorder %s66, %s67
      %p76 = scmp.eq.s32.totalorder %s21, 0
      %p77 = por %p75, %p76
      %p78 = scmp.ne.s32.totalorder %s66, %s67
      %p79 = scmp.eq.s32.totalorder %s22, 7
      %p80 = por %p78, %p79
      %p82 = scmp.ne.s32.totalorder %s67, %s81
      %p83 = scmp.eq.s32.totalorder %s22, 0
      %p84 = por %p82, %p83
      %s86 = sadd.s32 %s85, 1
      %p89 = scmp.eq.s32.totalorder %s16, 7
      %p90 = scmp.ne.s32.totalorder %s85, %s87
      %p91 = scmp.eq.s32.totalorder %s16, 0
      %p92 = por %p90, %p91
      %p93 = scmp.ne.s32.totalorder %s85, %s87
      %p94 = scmp.eq.s32.totalorder %s21, 7
      %p95 = por %p93, %p94
      %p96 = scmp.ne.s32.totalorder %s87, %s88
      %p97 = scmp.eq.s32.totalorder %s21, 0
      %p98 = por %p96, %p97
      %p99 = scmp.ne.s32.totalorder %s87, %s88
      %p100 = scmp.eq.s32.totalorder %s22, 7
      %p101 = por %p99, %p100
      %p103 = scmp.ne.s32.totalorder %s88, %s102
      %p104 = scmp.eq.s32.totalorder %s22, 0
      %p105 = por %p103, %p104
      %s107 = sadd.s32 %s106, 1
      %p110 = scmp.eq.s32.totalorder %s16, 7
      %p111 = scmp.ne.s32.totalorder %s106, %s108
      %p112 = scmp.eq.s32.totalorder %s16, 0
      %p113 = por %p111, %p112
      %p114 = scmp.ne.s32.totalorder %s106, %s108
      %p115 = scmp.eq.s32.totalorder %s21, 7
      %p116 = por %p114, %p115
      %p117 = scmp.ne.s32.totalorder %s108, %s109
      %p118 = scmp.eq.s32.totalorder %s21, 0
      %p119 = por %p117, %p118
      %p120 = scmp.ne.s32.totalorder %s108, %s109
      %p121 = scmp.eq.s32.totalorder %s22, 7
      %p122 = por %p120, %p121
      %p124 = scmp.ne.s32.totalorder %s109, %s123
      %p125 = scmp.eq.s32.totalorder %s22, 0
      %p126 = por %p124, %p125
      %s128 = sadd.s32 %s127, 1
      %p131 = scmp.eq.s32.totalorder %s16, 7
      %p132 = scmp.ne.s32.totalorder %s127, %s129
      %p133 = scmp.eq.s32.totalorder %s16, 0
      %p134 = por %p132, %p133
      %p135 = scmp.ne.s32.totalorder %s127, %s129
      %p136 = scmp.eq.s32.totalorder %s21, 7
      %p137 = por %p135, %p136
      %p138 = scmp.ne.s32.totalorder %s129, %s130
      %p139 = scmp.eq.s32.totalorder %s21, 0
      %p140 = por %p138, %p139
      %p141 = scmp.ne.s32.totalorder %s129, %s130
      %p142 = scmp.eq.s32.totalorder %s22, 7
      %p143 = por %p141, %p142
      %p145 = scmp.ne.s32.totalorder %s130, %s144
      %p146 = scmp.eq.s32.totalorder %s22, 0
      %p147 = por %p145, %p146
      %s149 = sadd.s32 %s148, 1
      %p152 = scmp.eq.s32.totalorder %s16, 7
      %p153 = scmp.ne.s32.totalorder %s148, %s150
      %p154 = scmp.eq.s32.totalorder %s16, 0
      %p155 = por %p153, %p154
      %p156 = scmp.ne.s32.totalorder %s148, %s150
      %p157 = scmp.eq.s32.totalorder %s21, 7
      %p158 = por %p156, %p157
      %p159 = scmp.ne.s32.totalorder %s150, %s151
      %p160 = scmp.eq.s32.totalorder %s21, 0
      %p161 = por %p159, %p160
      %p162 = scmp.ne.s32.totalorder %s150, %s151
      %p163 = scmp.eq.s32.totalorder %s22, 7
      %p164 = por %p162, %p163
      %p166 = scmp.ne.s32.totalorder %s151, %s165
      %p167 = scmp.eq.s32.totalorder %s22, 0
      %p168 = por %p166, %p167
      %s170 = sadd.s32 %s169, 1
      %p173 = scmp.eq.s32.totalorder %s16, 7
      %p174 = scmp.ne.s32.totalorder %s169, %s171
      %p175 = scmp.eq.s32.totalorder %s16, 0
      %p176 = por %p174, %p175
      %p177 = scmp.ne.s32.totalorder %s169, %s171
      %p178 = scmp.eq.s32.totalorder %s21, 7
      %p179 = por %p177, %p178
      %p180 = scmp.ne.s32.totalorder %s171, %s172
      %p181 = scmp.eq.s32.totalorder %s21, 0
      %p182 = por %p180, %p181
      %p183 = scmp.ne.s32.totalorder %s171, %s172
      %p184 = scmp.eq.s32.totalorder %s22, 7
      %p185 = por %p183, %p184
      %p187 = scmp.ne.s32.totalorder %s172, %s186
      %p188 = scmp.eq.s32.totalorder %s22, 0
      %p189 = por %p187, %p188
      %s191 = sadd.s32 %s190, 1
      %p194 = scmp.eq.s32.totalorder %s16, 7
      %p195 = scmp.ne.s32.totalorder %s190, %s192
      %p196 = scmp.eq.s32.totalorder %s16, 0
      %p197 = por %p195, %p196
      %p198 = scmp.ne.s32.totalorder %s190, %s192
      %p199 = scmp.eq.s32.totalorder %s21, 7
      %p200 = por %p198, %p199
      %p201 = scmp.ne.s32.totalorder %s192, %s193
      %p202 = scmp.eq.s32.totalorder %s21, 0
      %p203 = por %p201, %p202
      %p204 = scmp.ne.s32.totalorder %s192, %s193
      %p205 = scmp.eq.s32.totalorder %s22, 7
      %p206 = por %p204, %p205
      %p208 = scmp.ne.s32.totalorder %s193, %s207
      %p209 = scmp.eq.s32.totalorder %s22, 0
      %p210 = por %p208, %p209
      %s212 = sadd.s32 %s211, 1
      %p215 = scmp.eq.s32.totalorder %s16, 7
      %p216 = scmp.ne.s32.totalorder %s211, %s213
      %p217 = scmp.eq.s32.totalorder %s16, 0
      %p218 = por %p216, %p217
      %p219 = scmp.ne.s32.totalorder %s211, %s213
      %p220 = scmp.eq.s32.totalorder %s21, 7
      %p221 = por %p219, %p220
      %p222 = scmp.ne.s32.totalorder %s213, %s214
      %p223 = scmp.eq.s32.totalorder %s21, 0
      %p224 = por %p222, %p223
      %p225 = scmp.ne.s32.totalorder %s213, %s214
      %p226 = scmp.eq.s32.totalorder %s22, 7
      %p227 = por %p225, %p226
      %p229 = scmp.ne.s32.totalorder %s214, %s228
      %p230 = scmp.eq.s32.totalorder %s22, 0
      %p231 = por %p229, %p230
      %s232 = ssub.s32 %s23, %s35
      %p233 = scmp.eq.s32.totalorder %s232, 0
      %s235 = sadd.s32 %s234, 1
      %s236 = scalar_select %p233, %s234, %s235
      %p239 = pneg %p233
      %p240 = scmp.eq.s32.totalorder %s16, 7
      %p241 = por %p239, %p240
      %p242 = scmp.ne.s32.totalorder %s234, %s237
      %p243 = scmp.eq.s32.totalorder %s16, 0
      %p244 = por %p242, %p243
      %p245 = scmp.ne.s32.totalorder %s234, %s237
      %p246 = scmp.eq.s32.totalorder %s21, 7
      %p247 = por %p245, %p246
      %p248 = scmp.ne.s32.totalorder %s237, %s238
      %p249 = scmp.eq.s32.totalorder %s21, 0
      %p250 = por %p248, %p249
      %p251 = scmp.ne.s32.totalorder %s237, %s238
      %p252 = scmp.eq.s32.totalorder %s22, 7
      %p253 = por %p251, %p252
      %p255 = scmp.ne.s32.totalorder %s238, %s254
      %p256 = scmp.eq.s32.totalorder %s22, 0
      %p257 = por %p255, %p256
      %p258 = scmp.le.s32.totalorder 1, %s16
      %p259 = scmp.lt.s32.totalorder %s16, 9
      %p260 = pnand %p258, %p259
      %p261 = pneg %p260
      // Predicated region
      $region9: #{encoder_forward.1} parent=5 // pred_check
        _
      $region10: #{encoder_forward.1} parent=5 // pred_check_branch
        %263 = sbr.rel (%p260) target = $region12
      $region11: #{encoder_forward.1} parent=5 // pred_region
        %s264 = ssub.s32 %s16, 1
        // Predicated region
        $region13: #{encoder_forward.1} parent=11 // pred_check
          %p265 = pneg %p77
        $region14: #{encoder_forward.1} parent=11 // pred_check_branch
          %267 = sbr.rel (%p265) target = $region16
        $region15: #{encoder_forward.1} parent=11 // pred_region
          _
        $region16: #{encoder_forward.1} parent=11 // pred_fallthru
          _
        // Predicated region
        $region17: #{encoder_forward.1} parent=11 // pred_check
          %p268 = pneg %p98
        $region18: #{encoder_forward.1} parent=11 // pred_check_branch
          %270 = sbr.rel (%p268) target = $region20
        $region19: #{encoder_forward.1} parent=11 // pred_region
          _
        $region20: #{encoder_forward.1} parent=11 // pred_fallthru
          _
        // Predicated region
        $region21: #{encoder_forward.1} parent=11 // pred_check
          %p271 = pneg %p119
        $region22: #{encoder_forward.1} parent=11 // pred_check_branch
          %273 = sbr.rel (%p271) target = $region24
        $region23: #{encoder_forward.1} parent=11 // pred_region
          _
        $region24: #{encoder_forward.1} parent=11 // pred_fallthru
          _
        // Predicated region
        $region25: #{encoder_forward.1} parent=11 // pred_check
          %p274 = pneg %p140
        $region26: #{encoder_forward.1} parent=11 // pred_check_branch
          %276 = sbr.rel (%p274) target = $region28
        $region27: #{encoder_forward.1} parent=11 // pred_region
          _
        $region28: #{encoder_forward.1} parent=11 // pred_fallthru
          _
        // Predicated region
        $region29: #{encoder_forward.1} parent=11 // pred_check
          %p277 = pneg %p161
        $region30: #{encoder_forward.1} parent=11 // pred_check_branch
          %279 = sbr.rel (%p277) target = $region32
        $region31: #{encoder_forward.1} parent=11 // pred_region
          _
        $region32: #{encoder_forward.1} parent=11 // pred_fallthru
          _
        // Predicated region
        $region33: #{encoder_forward.1} parent=11 // pred_check
          %p280 = pneg %p182
        $region34: #{encoder_forward.1} parent=11 // pred_check_branch
          %282 = sbr.rel (%p280) target = $region36
        $region35: #{encoder_forward.1} parent=11 // pred_region
          _
        $region36: #{encoder_forward.1} parent=11 // pred_fallthru
          _
        // Predicated region
        $region37: #{encoder_forward.1} parent=11 // pred_check
          %p283 = pneg %p203
        $region38: #{encoder_forward.1} parent=11 // pred_check_branch
          %285 = sbr.rel (%p283) target = $region40
        $region39: #{encoder_forward.1} parent=11 // pred_region
          _
        $region40: #{encoder_forward.1} parent=11 // pred_fallthru
          _
        // Predicated region
        $region41: #{encoder_forward.1} parent=11 // pred_check
          %p286 = pneg %p224
        $region42: #{encoder_forward.1} parent=11 // pred_check_branch
          %288 = sbr.rel (%p286) target = $region44
        $region43: #{encoder_forward.1} parent=11 // pred_region
          _
        $region44: #{encoder_forward.1} parent=11 // pred_fallthru
          _
      $region12: #{encoder_forward.1} parent=5 // pred_fallthru
        _
      %p289 = scmp.lt.s32.totalorder %s16, 8
      // Predicated region
      $region45: #{encoder_forward.1} parent=5 // pred_check
        %p290 = pneg %p289
      $region46: #{encoder_forward.1} parent=5 // pred_check_branch
        %292 = sbr.rel (%p290) target = $region48
      $region47: #{encoder_forward.1} parent=5 // pred_region
        // Predicated region
        $region49: #{encoder_forward.1} parent=47 // pred_check
          %p293 = pneg %p50
        $region50: #{encoder_forward.1} parent=47 // pred_check_branch
          %295 = sbr.rel (%p293) target = $region52
        $region51: #{encoder_forward.1} parent=47 // pred_region
          %s296 = smul.u32 16, %s23
          %p297 = scmp.lt.s32.totalorder %s24, 7
          %s298 = scalar_select %p297, %s24, 7
          %p299 = scmp.lt.s32.totalorder %s296, 15
          %s300 = scalar_select %p299, %s296, 15
          %s301 = smul.addr %s298, 16
          %s302 = sadd.s32 %s300, %s301
          %s303 = smul.addr %s302, 8
          %s304 = scalar_lea.vmem %s0, %s303
          %s305 = smul.u32 16, %s23
        $region52: #{encoder_forward.1} parent=47 // pred_fallthru
          _
      $region48: #{encoder_forward.1} parent=5 // pred_fallthru
        _
      %p306 = scmp.le.s32.totalorder 1, %s16
      %p307 = scmp.lt.s32.totalorder %s16, 9
      %p308 = pnand %p306, %p307
      %p309 = pneg %p308
      // Predicated region
      $region53: #{encoder_forward.1} parent=5 // pred_check
        _
      $region54: #{encoder_forward.1} parent=5 // pred_check_branch
        %311 = sbr.rel (%p308) target = $region56
      $region55: #{encoder_forward.1} parent=5 // pred_region
        %s312 = ssub.s32 %s16, 1
        %s313 = smul.u32 16, %s25
        %p314 = scmp.lt.s32.totalorder %s26, 7
        %s315 = scalar_select %p314, %s26, 7
        %p316 = scmp.lt.s32.totalorder %s313, 15
        %s317 = scalar_select %p316, %s313, 15
        %s318 = smul.addr %s315, 16
        %s319 = sadd.s32 %s317, %s318
        %s320 = smul.addr %s319, 8
        %s321 = scalar_lea.vmem %s0, %s320
        %p322 = pneg %p56
        %p323 = pneg %p53
        %p324 = pneg %p77
        %p325 = pneg %p74
        %p326 = pneg %p98
        %p327 = pneg %p95
        %p328 = pneg %p119
        %p329 = pneg %p116
        %p330 = pneg %p140
        %p331 = pneg %p137
        %p332 = pneg %p161
        %p333 = pneg %p158
        %p334 = pneg %p182
        %p335 = pneg %p179
        %p336 = pneg %p203
        %p337 = pneg %p200
        %p338 = pneg %p224
        %p339 = pneg %p221
        %p340 = pneg %p250
        %p341 = pneg %p247
        %s342 = smul.u32 16, %s25
        %p343 = scmp.lt.s32.totalorder %s26, 7
        %s344 = scalar_select %p343, %s26, 7
        %p345 = scmp.lt.s32.totalorder %s342, 15
        %s346 = scalar_select %p345, %s342, 15
        %s347 = smul.addr %s344, 16
        %s348 = sadd.s32 %s346, %s347
        %s349 = smul.addr %s348, 8
        %s350 = scalar_lea.vmem %s0, %s349
        %s351 = smul.u32 16, %s25
        %s352 = smul.u32 16, %s25
        %p354 = scmp.eq.s32.totalorder %s26, 0
        // Predicated region
        $region57: #{encoder_forward.1} parent=55 // pred_check
          %p355 = pneg %p354
        $region58: #{encoder_forward.1} parent=55 // pred_check_branch
          %357 = sbr.rel (%p355) target = $region60
        $region59: #{encoder_forward.1} parent=55 // pred_region
          %358 = vst [vmem:[#allocation2] sm:$0xff] 0.0
          %359 = vst [vmem:[#allocation2 + $0x8] sm:$0xff] 0.0
          %360 = vst [vmem:[#allocation2 + $0x10] sm:$0xff] 0.0
          %361 = vst [vmem:[#allocation2 + $0x18] sm:$0xff] 0.0
          %362 = vst [vmem:[#allocation2 + $0x20] sm:$0xff] 0.0
          %363 = vst [vmem:[#allocation2 + $0x28] sm:$0xff] 0.0
          %364 = vst [vmem:[#allocation2 + $0x30] sm:$0xff] 0.0
          %365 = vst [vmem:[#allocation2 + $0x38] sm:$0xff] 0.0
          %366 = vst [vmem:[#allocation2 + $0x40] sm:$0xff] 0.0
          %367 = vst [vmem:[#allocation2 + $0x48] sm:$0xff] 0.0
          %368 = vst [vmem:[#allocation2 + $0x50] sm:$0xff] 0.0
          %369 = vst [vmem:[#allocation2 + $0x58] sm:$0xff] 0.0
          %370 = vst [vmem:[#allocation2 + $0x60] sm:$0xff] 0.0
          %371 = vst [vmem:[#allocation2 + $0x68] sm:$0xff] 0.0
          %372 = vst [vmem:[#allocation2 + $0x70] sm:$0xff] 0.0
          %373 = vst [vmem:[#allocation2 + $0x78] sm:$0xff] 0.0
          %374 = vst [vmem:[#allocation2 + $0x80] sm:$0xff] 0.0
          %375 = vst [vmem:[#allocation2 + $0x88] sm:$0xff] 0.0
          %376 = vst [vmem:[#allocation2 + $0x90] sm:$0xff] 0.0
          %377 = vst [vmem:[#allocation2 + $0x98] sm:$0xff] 0.0
          %378 = vst [vmem:[#allocation2 + $0xa0] sm:$0xff] 0.0
          %379 = vst [vmem:[#allocation2 + $0xa8] sm:$0xff] 0.0
          %380 = vst [vmem:[#allocation2 + $0xb0] sm:$0xff] 0.0
          %381 = vst [vmem:[#allocation2 + $0xb8] sm:$0xff] 0.0
          %382 = vst [vmem:[#allocation2 + $0xc0] sm:$0xff] 0.0
          %383 = vst [vmem:[#allocation2 + $0xc8] sm:$0xff] 0.0
          %384 = vst [vmem:[#allocation2 + $0xd0] sm:$0xff] 0.0
          %385 = vst [vmem:[#allocation2 + $0xd8] sm:$0xff] 0.0
          %386 = vst [vmem:[#allocation2 + $0xe0] sm:$0xff] 0.0
          %387 = vst [vmem:[#allocation2 + $0xe8] sm:$0xff] 0.0
          %388 = vst [vmem:[#allocation2 + $0xf0] sm:$0xff] 0.0
          %389 = vst [vmem:[#allocation2 + $0xf8] sm:$0xff] 0.0
        $region60: #{encoder_forward.1} parent=55 // pred_fallthru
          _
        %v390 = vld [vmem:[%s350] sm:$0xff]
        %v391 = vld [vmem:[%s350 + $0x8] sm:$0xff]
        %v392 = vld [vmem:[%s350 + $0x10] sm:$0xff]
        %v393 = vld [vmem:[%s350 + $0x18] sm:$0xff]
        %v394 = vld [vmem:[%s350 + $0x20] sm:$0xff]
        %v395 = vld [vmem:[%s350 + $0x28] sm:$0xff]
        %v396 = vld [vmem:[%s350 + $0x30] sm:$0xff]
        %v397 = vld [vmem:[%s350 + $0x38] sm:$0xff]
        %v398 = vld [vmem:[%s350 + $0x40] sm:$0xff]
        %v399 = vld [vmem:[%s350 + $0x48] sm:$0xff]
        %v400 = vld [vmem:[%s350 + $0x50] sm:$0xff]
        %v401 = vld [vmem:[%s350 + $0x58] sm:$0xff]
        %v402 = vld [vmem:[%s350 + $0x60] sm:$0xff]
        %v403 = vld [vmem:[%s350 + $0x68] sm:$0xff]
        %v404 = vld [vmem:[%s350 + $0x70] sm:$0xff]
        %v405 = vld [vmem:[%s350 + $0x78] sm:$0xff]
        %v406 = vld [vmem:[#allocation2] sm:$0xff]
        %v407 = vld [vmem:[#allocation2 + $0x8] sm:$0xff]
        %v408 = vld [vmem:[#allocation2 + $0x10] sm:$0xff]
        %v409 = vld [vmem:[#allocation2 + $0x18] sm:$0xff]
        %v410 = vld [vmem:[#allocation2 + $0x20] sm:$0xff]
        %v411 = vld [vmem:[#allocation2 + $0x28] sm:$0xff]
        %v412 = vld [vmem:[#allocation2 + $0x30] sm:$0xff]
        %v413 = vld [vmem:[#allocation2 + $0x38] sm:$0xff]
        %v414 = vld [vmem:[#allocation2 + $0x40] sm:$0xff]
        %v415 = vld [vmem:[#allocation2 + $0x48] sm:$0xff]
        %v416 = vld [vmem:[#allocation2 + $0x50] sm:$0xff]
        %v417 = vld [vmem:[#allocation2 + $0x58] sm:$0xff]
        %v418 = vld [vmem:[#allocation2 + $0x60] sm:$0xff]
        %v419 = vld [vmem:[#allocation2 + $0x68] sm:$0xff]
        %v420 = vld [vmem:[#allocation2 + $0x70] sm:$0xff]
        %v421 = vld [vmem:[#allocation2 + $0x78] sm:$0xff]
        %v422 = vpack.c.bf16 %v391, %v390
        %v423 = vpack.c.bf16 %v393, %v392
        %v424 = vpack.c.bf16 %v395, %v394
        %v425 = vpack.c.bf16 %v397, %v396
        %v426 = vpack.c.bf16 %v399, %v398
        %v427 = vpack.c.bf16 %v401, %v400
        %v428 = vpack.c.bf16 %v403, %v402
        %v429 = vpack.c.bf16 %v405, %v404
        %v430 = vld [vmem:[%s1] sm:$0xff]
        %v431 = vld [vmem:[%s1 + $0x8] sm:$0xf]
        %v432 = vld [vmem:[%s1 + $0xc] sm:$0xff]
        %v433 = vld [vmem:[%s1 + $0x14] sm:$0xf]
        %v434 = vld [vmem:[%s1 + $0x18] sm:$0xff]
        %v435 = vld [vmem:[%s1 + $0x20] sm:$0xf]
        %v436 = vld [vmem:[%s1 + $0x24] sm:$0xff]
        %v437 = vld [vmem:[%s1 + $0x2c] sm:$0xf]
        %v438 = vld [vmem:[%s3] sm:$0x7]
        %v440 = vlaneseq
        %v441 = vshrl.u32 %v440, 7
        %v442 = vsub.s32 0, %v441
        %v443 = vrot.slane %v438, %v442
        %v444 = vlaneseq
        %v445 = vshrl.u32 %v444, 7
        %v446 = vsub.s32 1, %v445
        %v447 = vrot.slane %v438, %v446
        %v448 = vlaneseq
        %v449 = vshrl.u32 %v448, 7
        %v450 = vsub.s32 2, %v449
        %v451 = vrot.slane %v438, %v450
        %v463 = vunpack.c.l.b16 %v430
        %v464 = vunpack.c.h.b16 %v430
        %v465 = vunpack.c.l.b16 %v431
        %v466 = vunpack.c.l.b16 %v432
        %v467 = vunpack.c.h.b16 %v432
        %v468 = vunpack.c.l.b16 %v433
        %v469 = vunpack.c.l.b16 %v434
        %v470 = vunpack.c.h.b16 %v434
        %v471 = vunpack.c.l.b16 %v435
        %v472 = vunpack.c.l.b16 %v436
        %v473 = vunpack.c.h.b16 %v436
        %v474 = vunpack.c.l.b16 %v437
        %v475 = vpack.c.b16 %v466, %v463
        %v476 = vpack.c.b16 %v467, %v464
        %v477 = vpack.c.b16 %v468, %v465
        %v478 = vpack.c.b16 %v472, %v469
        %v479 = vpack.c.b16 %v473, %v470
        %v480 = vpack.c.b16 %v474, %v471
        %vm487 = vcmask 261120
        %v489 = vsel %vm487, %v422, 0
        %v492 = vsel %vm487, %v423, 0
        %v495 = vsel %vm487, %v424, 0
        %v498 = vsel %vm487, %v425, 0
        %v501 = vsel %vm487, %v426, 0
        %v504 = vsel %vm487, %v427, 0
        %v507 = vsel %vm487, %v428, 0
        %v510 = vsel %vm487, %v429, 0
        %512 = vmatprep.subr.bf16.mxu0 0
        %513 = vmatpush1.bf16.msra.mxu0 0
        %514 = vmatprep.subr.bf16.mxu0 0
        %515 = vmatpush1.bf16.msra.mxu0 0
        %516 = vmatprep.subr.bf16.mxu0 0
        %517 = vmatpush1.bf16.msra.mxu0 0
        %518 = vmatprep.subr.bf16.mxu0 0
        %519 = vmatpush1.bf16.msra.mxu0 0
        %520 = vmatprep.subr.bf16.mxu0 0
        %521 = vmatpush1.bf16.msra.mxu0 0
        %522 = vmatprep.subr.bf16.mxu0 0
        %523 = vmatpush1.bf16.msra.mxu0 0
        %524 = vmatprep.subr.bf16.mxu0 %v479
        %525 = vmatpush1.bf16.msra.mxu0 %v478
        %526 = vmatprep.subr.bf16.mxu0 %v476
        %527 = vmatpush1.bf16.msra.mxu0 %v475
        %528 = vmatprep.subr.bf16.mxu0 0
        %529 = vmatpush2.bf16.msra.mxu0 0
        %530 = vmatprep.subr.bf16.mxu0 0
        %531 = vmatpush2.bf16.msra.mxu0 0
        %532 = vmatprep.subr.bf16.mxu0 0
        %533 = vmatpush2.bf16.msra.mxu0 0
        %534 = vmatprep.subr.bf16.mxu0 0
        %535 = vmatpush2.bf16.msra.mxu0 0
        %536 = vmatprep.subr.bf16.mxu0 0
        %537 = vmatpush2.bf16.msra.mxu0 0
        %538 = vmatprep.subr.bf16.mxu0 0
        %539 = vmatpush2.bf16.msra.mxu0 0
        %540 = vmatprep.subr.bf16.mxu0 0
        %541 = vmatpush2.bf16.msra.mxu0 0
        %542 = vmatprep.subr.bf16.mxu0 0
        %543 = vmatpush2.bf16.msra.mxu0 0
        %544 = vmatprep.mubr.bf16.mxu0 0
        %545 = vmatmul.mubr.bf16.gmra.mxu0 %v489
        %v546 = vpop.f32.mrf.mxu0
        %v547 = vadd.f32 %v443, %v546
        %v548 = vpop.f32.mrf.mxu0
        %v549 = vadd.f32 %v447, %v548
        %v550 = vpop.f32.mrf.mxu0
        %v551 = vadd.f32 %v443, %v550
        %v552 = vpop.f32.mrf.mxu0
        %v553 = vadd.f32 %v447, %v552
        %554 = vmatprep.mubr.bf16.mxu0 0
        %555 = vmatmul.mubr.bf16.gmra.mxu0 %v492
        %v556 = vpop.f32.mrf.mxu0
        %v557 = vadd.f32 %v443, %v556
        %v558 = vpop.f32.mrf.mxu0
        %v559 = vadd.f32 %v447, %v558
        %v560 = vpop.f32.mrf.mxu0
        %v561 = vadd.f32 %v443, %v560
        %v562 = vpop.f32.mrf.mxu0
        %v563 = vadd.f32 %v447, %v562
        %564 = vmatprep.mubr.bf16.mxu0 0
        %565 = vmatmul.mubr.bf16.gmra.mxu0 %v495
        %v566 = vpop.f32.mrf.mxu0
        %v567 = vadd.f32 %v443, %v566
        %v568 = vpop.f32.mrf.mxu0
        %v569 = vadd.f32 %v447, %v568
        %v570 = vpop.f32.mrf.mxu0
        %v571 = vadd.f32 %v443, %v570
        %v572 = vpop.f32.mrf.mxu0
        %v573 = vadd.f32 %v447, %v572
        %574 = vmatprep.mubr.bf16.mxu0 0
        %575 = vmatmul.mubr.bf16.gmra.mxu0 %v498
        %v576 = vpop.f32.mrf.mxu0
        %v577 = vadd.f32 %v443, %v576
        %v578 = vpop.f32.mrf.mxu0
        %v579 = vadd.f32 %v447, %v578
        %v580 = vpop.f32.mrf.mxu0
        %v581 = vadd.f32 %v443, %v580
        %v582 = vpop.f32.mrf.mxu0
        %v583 = vadd.f32 %v447, %v582
        %584 = vmatprep.mubr.bf16.mxu0 0
        %585 = vmatmul.mubr.bf16.gmra.mxu0 %v501
        %v586 = vpop.f32.mrf.mxu0
        %v587 = vadd.f32 %v443, %v586
        %v588 = vpop.f32.mrf.mxu0
        %v589 = vadd.f32 %v447, %v588
        %v590 = vpop.f32.mrf.mxu0
        %v591 = vadd.f32 %v443, %v590
        %v592 = vpop.f32.mrf.mxu0
        %v593 = vadd.f32 %v447, %v592
        %594 = vmatprep.mubr.bf16.mxu0 0
        %595 = vmatmul.mubr.bf16.gmra.mxu0 %v504
        %v596 = vpop.f32.mrf.mxu0
        %v597 = vadd.f32 %v443, %v596
        %v598 = vpop.f32.mrf.mxu0
        %v599 = vadd.f32 %v447, %v598
        %v600 = vpop.f32.mrf.mxu0
        %v601 = vadd.f32 %v443, %v600
        %v602 = vpop.f32.mrf.mxu0
        %v603 = vadd.f32 %v447, %v602
        %604 = vmatprep.mubr.bf16.mxu0 0
        %605 = vmatmul.mubr.bf16.gmra.mxu0 %v507
        %v606 = vpop.f32.mrf.mxu0
        %v607 = vadd.f32 %v443, %v606
        %v608 = vpop.f32.mrf.mxu0
        %v609 = vadd.f32 %v447, %v608
        %v610 = vpop.f32.mrf.mxu0
        %v611 = vadd.f32 %v443, %v610
        %v612 = vpop.f32.mrf.mxu0
        %v613 = vadd.f32 %v447, %v612
        %614 = vmatprep.mubr.bf16.mxu0 0
        %615 = vmatmul.mubr.bf16.gmra.mxu0 %v510
        %v616 = vpop.f32.mrf.mxu0
        %v617 = vadd.f32 %v443, %v616
        %v618 = vpop.f32.mrf.mxu0
        %v619 = vadd.f32 %v447, %v618
        %v620 = vpop.f32.mrf.mxu0
        %v621 = vadd.f32 %v443, %v620
        %v622 = vpop.f32.mrf.mxu0
        %v623 = vadd.f32 %v447, %v622
        %624 = vdwg.mxu0
        %625 = vmatprep.subr.bf16.mxu0 0
        %626 = vmatpush1.bf16.msra.mxu0 0
        %627 = vmatprep.subr.bf16.mxu0 0
        %628 = vmatpush1.bf16.msra.mxu0 0
        %629 = vmatprep.subr.bf16.mxu0 0
        %630 = vmatpush1.bf16.msra.mxu0 0
        %631 = vmatprep.subr.bf16.mxu0 0
        %632 = vmatpush1.bf16.msra.mxu0 0
        %633 = vmatprep.subr.bf16.mxu0 0
        %634 = vmatpush1.bf16.msra.mxu0 0
        %635 = vmatprep.subr.bf16.mxu0 0
        %636 = vmatpush1.bf16.msra.mxu0 0
        %637 = vmatprep.subr.bf16.mxu0 0
        %638 = vmatpush1.bf16.msra.mxu0 %v480
        %639 = vmatprep.subr.bf16.mxu0 0
        %640 = vmatpush1.bf16.msra.mxu0 %v477
        %641 = vmatprep.subr.bf16.mxu0 0
        %642 = vmatpush2.bf16.msra.mxu0 0
        %643 = vmatprep.subr.bf16.mxu0 0
        %644 = vmatpush2.bf16.msra.mxu0 0
        %645 = vmatprep.subr.bf16.mxu0 0
        %646 = vmatpush2.bf16.msra.mxu0 0
        %647 = vmatprep.subr.bf16.mxu0 0
        %648 = vmatpush2.bf16.msra.mxu0 0
        %649 = vmatprep.subr.bf16.mxu0 0
        %650 = vmatpush2.bf16.msra.mxu0 0
        %651 = vmatprep.subr.bf16.mxu0 0
        %652 = vmatpush2.bf16.msra.mxu0 0
        %653 = vmatprep.subr.bf16.mxu0 0
        %654 = vmatpush2.bf16.msra.mxu0 0
        %655 = vmatprep.subr.bf16.mxu0 0
        %656 = vmatpush2.bf16.msra.mxu0 0
        %657 = vmatprep.mubr.bf16.mxu0 0
        %658 = vmatmul.mubr.bf16.gmra.mxu0 %v489
        %v659 = vpop.f32.mrf.mxu0
        %v660 = vadd.f32 %v451, %v659
        %v661 = vpop.f32.mrf.mxu0
        %v662 = vpop.f32.mrf.mxu0
        %v663 = vadd.f32 %v451, %v662
        %v664 = vpop.f32.mrf.mxu0
        %665 = vmatprep.mubr.bf16.mxu0 0
        %666 = vmatmul.mubr.bf16.gmra.mxu0 %v492
        %v667 = vpop.f32.mrf.mxu0
        %v668 = vadd.f32 %v451, %v667
        %v669 = vpop.f32.mrf.mxu0
        %v670 = vpop.f32.mrf.mxu0
        %v671 = vadd.f32 %v451, %v670
        %v672 = vpop.f32.mrf.mxu0
        %673 = vmatprep.mubr.bf16.mxu0 0
        %674 = vmatmul.mubr.bf16.gmra.mxu0 %v495
        %v675 = vpop.f32.mrf.mxu0
        %v676 = vadd.f32 %v451, %v675
        %v677 = vpop.f32.mrf.mxu0
        %v678 = vpop.f32.mrf.mxu0
        %v679 = vadd.f32 %v451, %v678
        %v680 = vpop.f32.mrf.mxu0
        %681 = vmatprep.mubr.bf16.mxu0 0
        %682 = vmatmul.mubr.bf16.gmra.mxu0 %v498
        %v683 = vpop.f32.mrf.mxu0
        %v684 = vadd.f32 %v451, %v683
        %v685 = vpop.f32.mrf.mxu0
        %v686 = vpop.f32.mrf.mxu0
        %v687 = vadd.f32 %v451, %v686
        %v688 = vpop.f32.mrf.mxu0
        %689 = vmatprep.mubr.bf16.mxu0 0
        %690 = vmatmul.mubr.bf16.gmra.mxu0 %v501
        %v691 = vpop.f32.mrf.mxu0
        %v692 = vadd.f32 %v451, %v691
        %v693 = vpop.f32.mrf.mxu0
        %v694 = vpop.f32.mrf.mxu0
        %v695 = vadd.f32 %v451, %v694
        %v696 = vpop.f32.mrf.mxu0
        %697 = vmatprep.mubr.bf16.mxu0 0
        %698 = vmatmul.mubr.bf16.gmra.mxu0 %v504
        %v699 = vpop.f32.mrf.mxu0
        %v700 = vadd.f32 %v451, %v699
        %v701 = vpop.f32.mrf.mxu0
        %v702 = vpop.f32.mrf.mxu0
        %v703 = vadd.f32 %v451, %v702
        %v704 = vpop.f32.mrf.mxu0
        %705 = vmatprep.mubr.bf16.mxu0 0
        %706 = vmatmul.mubr.bf16.gmra.mxu0 %v507
        %v707 = vpop.f32.mrf.mxu0
        %v708 = vadd.f32 %v451, %v707
        %v709 = vpop.f32.mrf.mxu0
        %v710 = vpop.f32.mrf.mxu0
        %v711 = vadd.f32 %v451, %v710
        %v712 = vpop.f32.mrf.mxu0
        %713 = vmatprep.mubr.bf16.mxu0 0
        %714 = vmatmul.mubr.bf16.gmra.mxu0 %v510
        %v715 = vpop.f32.mrf.mxu0
        %v716 = vadd.f32 %v451, %v715
        %v717 = vpop.f32.mrf.mxu0
        %v718 = vpop.f32.mrf.mxu0
        %v719 = vadd.f32 %v451, %v718
        %v720 = vpop.f32.mrf.mxu0
        %721 = vdwg.mxu0
        %v722 = vpack.c.bf16 %v407, %v406
        %v723 = vpack.c.bf16 %v409, %v408
        %v724 = vpack.c.bf16 %v411, %v410
        %v725 = vpack.c.bf16 %v413, %v412
        %v726 = vpack.c.bf16 %v415, %v414
        %v727 = vpack.c.bf16 %v417, %v416
        %v728 = vpack.c.bf16 %v419, %v418
        %v729 = vpack.c.bf16 %v421, %v420
        %v730 = vld [vmem:[%s2] sm:$0xff]
        %v731 = vld [vmem:[%s2 + $0x8] sm:$0xf]
        %v732 = vld [vmem:[%s2 + $0xc] sm:$0xff]
        %v733 = vld [vmem:[%s2 + $0x14] sm:$0xf]
        %v734 = vld [vmem:[%s2 + $0x18] sm:$0xff]
        %v735 = vld [vmem:[%s2 + $0x20] sm:$0xf]
        %v736 = vld [vmem:[%s2 + $0x24] sm:$0xff]
        %v737 = vld [vmem:[%s2 + $0x2c] sm:$0xf]
        %v738 = vld [vmem:[%s2 + $0x30] sm:$0xff]
        %v739 = vld [vmem:[%s2 + $0x38] sm:$0xf]
        %v740 = vld [vmem:[%s2 + $0x3c] sm:$0xff]
        %v741 = vld [vmem:[%s2 + $0x44] sm:$0xf]
        %v742 = vld [vmem:[%s2 + $0x48] sm:$0xff]
        %v743 = vld [vmem:[%s2 + $0x50] sm:$0xf]
        %v744 = vld [vmem:[%s2 + $0x54] sm:$0xff]
        %v745 = vld [vmem:[%s2 + $0x5c] sm:$0xf]
        %v746 = vld [vmem:[%s2 + $0x60] sm:$0xff]
        %v747 = vld [vmem:[%s2 + $0x68] sm:$0xf]
        %v748 = vld [vmem:[%s2 + $0x6c] sm:$0xff]
        %v749 = vld [vmem:[%s2 + $0x74] sm:$0xf]
        %v750 = vld [vmem:[%s2 + $0x78] sm:$0xff]
        %v751 = vld [vmem:[%s2 + $0x80] sm:$0xf]
        %v752 = vld [vmem:[%s2 + $0x84] sm:$0xff]
        %v753 = vld [vmem:[%s2 + $0x8c] sm:$0xf]
        %v754 = vld [vmem:[%s2 + $0x90] sm:$0xff]
        %v755 = vld [vmem:[%s2 + $0x98] sm:$0xf]
        %v756 = vld [vmem:[%s2 + $0x9c] sm:$0xff]
        %v757 = vld [vmem:[%s2 + $0xa4] sm:$0xf]
        %v758 = vld [vmem:[%s2 + $0xa8] sm:$0xff]
        %v759 = vld [vmem:[%s2 + $0xb0] sm:$0xf]
        %v760 = vld [vmem:[%s2 + $0xb4] sm:$0xff]
        %v761 = vld [vmem:[%s2 + $0xbc] sm:$0xf]
        %v794 = vunpack.c.l.b16 %v730
        %v795 = vunpack.c.h.b16 %v730
        %v796 = vunpack.c.l.b16 %v731
        %v797 = vunpack.c.l.b16 %v732
        %v798 = vunpack.c.h.b16 %v732
        %v799 = vunpack.c.l.b16 %v733
        %v800 = vunpack.c.l.b16 %v734
        %v801 = vunpack.c.h.b16 %v734
        %v802 = vunpack.c.l.b16 %v735
        %v803 = vunpack.c.l.b16 %v736
        %v804 = vunpack.c.h.b16 %v736
        %v805 = vunpack.c.l.b16 %v737
        %v806 = vunpack.c.l.b16 %v738
        %v807 = vunpack.c.h.b16 %v738
        %v808 = vunpack.c.l.b16 %v739
        %v809 = vunpack.c.l.b16 %v740
        %v810 = vunpack.c.h.b16 %v740
        %v811 = vunpack.c.l.b16 %v741
        %v812 = vunpack.c.l.b16 %v742
        %v813 = vunpack.c.h.b16 %v742
        %v814 = vunpack.c.l.b16 %v743
        %v815 = vunpack.c.l.b16 %v744
        %v816 = vunpack.c.h.b16 %v744
        %v817 = vunpack.c.l.b16 %v745
        %v818 = vunpack.c.l.b16 %v746
        %v819 = vunpack.c.h.b16 %v746
        %v820 = vunpack.c.l.b16 %v747
        %v821 = vunpack.c.l.b16 %v748
        %v822 = vunpack.c.h.b16 %v748
        %v823 = vunpack.c.l.b16 %v749
        %v824 = vunpack.c.l.b16 %v750
        %v825 = vunpack.c.h.b16 %v750
        %v826 = vunpack.c.l.b16 %v751
        %v827 = vunpack.c.l.b16 %v752
        %v828 = vunpack.c.h.b16 %v752
        %v829 = vunpack.c.l.b16 %v753
        %v830 = vunpack.c.l.b16 %v754
        %v831 = vunpack.c.h.b16 %v754
        %v832 = vunpack.c.l.b16 %v755
        %v833 = vunpack.c.l.b16 %v756
        %v834 = vunpack.c.h.b16 %v756
        %v835 = vunpack.c.l.b16 %v757
        %v836 = vunpack.c.l.b16 %v758
        %v837 = vunpack.c.h.b16 %v758
        %v838 = vunpack.c.l.b16 %v759
        %v839 = vunpack.c.l.b16 %v760
        %v840 = vunpack.c.h.b16 %v760
        %v841 = vunpack.c.l.b16 %v761
        %v842 = vpack.c.b16 %v797, %v794
        %v843 = vpack.c.b16 %v798, %v795
        %v844 = vpack.c.b16 %v799, %v796
        %v845 = vpack.c.b16 %v803, %v800
        %v846 = vpack.c.b16 %v804, %v801
        %v847 = vpack.c.b16 %v805, %v802
        %v848 = vpack.c.b16 %v809, %v806
        %v849 = vpack.c.b16 %v810, %v807
        %v850 = vpack.c.b16 %v811, %v808
        %v851 = vpack.c.b16 %v815, %v812
        %v852 = vpack.c.b16 %v816, %v813
        %v853 = vpack.c.b16 %v817, %v814
        %v854 = vpack.c.b16 %v821, %v818
        %v855 = vpack.c.b16 %v822, %v819
        %v856 = vpack.c.b16 %v823, %v820
        %v857 = vpack.c.b16 %v827, %v824
        %v858 = vpack.c.b16 %v828, %v825
        %v859 = vpack.c.b16 %v829, %v826
        %v860 = vpack.c.b16 %v833, %v830
        %v861 = vpack.c.b16 %v834, %v831
        %v862 = vpack.c.b16 %v835, %v832
        %v863 = vpack.c.b16 %v839, %v836
        %v864 = vpack.c.b16 %v840, %v837
        %v865 = vpack.c.b16 %v841, %v838
        %890 = vmatprep.subr.bf16.mxu0 %v864
        %891 = vmatpush1.bf16.msra.mxu0 %v863
        %892 = vmatprep.subr.bf16.mxu0 %v861
        %893 = vmatpush1.bf16.msra.mxu0 %v860
        %894 = vmatprep.subr.bf16.mxu0 %v858
        %895 = vmatpush1.bf16.msra.mxu0 %v857
        %896 = vmatprep.subr.bf16.mxu0 %v855
        %897 = vmatpush1.bf16.msra.mxu0 %v854
        %898 = vmatprep.subr.bf16.mxu0 %v852
        %899 = vmatpush1.bf16.msra.mxu0 %v851
        %900 = vmatprep.subr.bf16.mxu0 %v849
        %901 = vmatpush1.bf16.msra.mxu0 %v848
        %902 = vmatprep.subr.bf16.mxu0 %v846
        %903 = vmatpush1.bf16.msra.mxu0 %v845
        %904 = vmatprep.subr.bf16.mxu0 %v843
        %905 = vmatpush1.bf16.msra.mxu0 %v842
        %906 = vmatprep.subr.bf16.mxu0 0
        %907 = vmatpush2.bf16.msra.mxu0 0
        %908 = vmatprep.subr.bf16.mxu0 0
        %909 = vmatpush2.bf16.msra.mxu0 0
        %910 = vmatprep.subr.bf16.mxu0 0
        %911 = vmatpush2.bf16.msra.mxu0 0
        %912 = vmatprep.subr.bf16.mxu0 0
        %913 = vmatpush2.bf16.msra.mxu0 0
        %914 = vmatprep.subr.bf16.mxu0 0
        %915 = vmatpush2.bf16.msra.mxu0 0
        %916 = vmatprep.subr.bf16.mxu0 0
        %917 = vmatpush2.bf16.msra.mxu0 0
        %918 = vmatprep.subr.bf16.mxu0 0
        %919 = vmatpush2.bf16.msra.mxu0 0
        %920 = vmatprep.subr.bf16.mxu0 0
        %921 = vmatpush2.bf16.msra.mxu0 0
        %922 = vmatprep.mubr.bf16.mxu0 0
        %923 = vmatmul.mubr.bf16.gmra.mxu0 %v722
        %v924 = vpop.f32.mrf.mxu0
        %v925 = vadd.f32 0.0, %v924
        %v926 = vpop.f32.mrf.mxu0
        %v927 = vadd.f32 0.0, %v926
        %v928 = vpop.f32.mrf.mxu0
        %v929 = vadd.f32 0.0, %v928
        %v930 = vpop.f32.mrf.mxu0
        %v931 = vadd.f32 0.0, %v930
        %932 = vmatprep.mubr.bf16.mxu0 0
        %933 = vmatmul.mubr.bf16.gmra.mxu0 %v723
        %v934 = vpop.f32.mrf.mxu0
        %v935 = vadd.f32 0.0, %v934
        %v936 = vpop.f32.mrf.mxu0
        %v937 = vadd.f32 0.0, %v936
        %v938 = vpop.f32.mrf.mxu0
        %v939 = vadd.f32 0.0, %v938
        %v940 = vpop.f32.mrf.mxu0
        %v941 = vadd.f32 0.0, %v940
        %942 = vmatprep.mubr.bf16.mxu0 0
        %943 = vmatmul.mubr.bf16.gmra.mxu0 %v724
        %v944 = vpop.f32.mrf.mxu0
        %v945 = vadd.f32 0.0, %v944
        %v946 = vpop.f32.mrf.mxu0
        %v947 = vadd.f32 0.0, %v946
        %v948 = vpop.f32.mrf.mxu0
        %v949 = vadd.f32 0.0, %v948
        %v950 = vpop.f32.mrf.mxu0
        %v951 = vadd.f32 0.0, %v950
        %952 = vmatprep.mubr.bf16.mxu0 0
        %953 = vmatmul.mubr.bf16.gmra.mxu0 %v725
        %v954 = vpop.f32.mrf.mxu0
        %v955 = vadd.f32 0.0, %v954
        %v956 = vpop.f32.mrf.mxu0
        %v957 = vadd.f32 0.0, %v956
        %v958 = vpop.f32.mrf.mxu0
        %v959 = vadd.f32 0.0, %v958
        %v960 = vpop.f32.mrf.mxu0
        %v961 = vadd.f32 0.0, %v960
        %962 = vmatprep.mubr.bf16.mxu0 0
        %963 = vmatmul.mubr.bf16.gmra.mxu0 %v726
        %v964 = vpop.f32.mrf.mxu0
        %v965 = vadd.f32 0.0, %v964
        %v966 = vpop.f32.mrf.mxu0
        %v967 = vadd.f32 0.0, %v966
        %v968 = vpop.f32.mrf.mxu0
        %v969 = vadd.f32 0.0, %v968
        %v970 = vpop.f32.mrf.mxu0
        %v971 = vadd.f32 0.0, %v970
        %972 = vmatprep.mubr.bf16.mxu0 0
        %973 = vmatmul.mubr.bf16.gmra.mxu0 %v727
        %v974 = vpop.f32.mrf.mxu0
        %v975 = vadd.f32 0.0, %v974
        %v976 = vpop.f32.mrf.mxu0
        %v977 = vadd.f32 0.0, %v976
        %v978 = vpop.f32.mrf.mxu0
        %v979 = vadd.f32 0.0, %v978
        %v980 = vpop.f32.mrf.mxu0
        %v981 = vadd.f32 0.0, %v980
        %982 = vmatprep.mubr.bf16.mxu0 0
        %983 = vmatmul.mubr.bf16.gmra.mxu0 %v728
        %v984 = vpop.f32.mrf.mxu0
        %v985 = vadd.f32 0.0, %v984
        %v986 = vpop.f32.mrf.mxu0
        %v987 = vadd.f32 0.0, %v986
        %v988 = vpop.f32.mrf.mxu0
        %v989 = vadd.f32 0.0, %v988
        %v990 = vpop.f32.mrf.mxu0
        %v991 = vadd.f32 0.0, %v990
        %992 = vmatprep.mubr.bf16.mxu0 0
        %993 = vmatmul.mubr.bf16.gmra.mxu0 %v729
        %v994 = vpop.f32.mrf.mxu0
        %v995 = vadd.f32 0.0, %v994
        %v996 = vpop.f32.mrf.mxu0
        %v997 = vadd.f32 0.0, %v996
        %v998 = vpop.f32.mrf.mxu0
        %v999 = vadd.f32 0.0, %v998
        %v1000 = vpop.f32.mrf.mxu0
        %v1001 = vadd.f32 0.0, %v1000
        %1002 = vdwg.mxu0
        %1003 = vmatprep.subr.bf16.mxu0 0
        %1004 = vmatpush1.bf16.msra.mxu0 %v865
        %1005 = vmatprep.subr.bf16.mxu0 0
        %1006 = vmatpush1.bf16.msra.mxu0 %v862
        %1007 = vmatprep.subr.bf16.mxu0 0
        %1008 = vmatpush1.bf16.msra.mxu0 %v859
        %1009 = vmatprep.subr.bf16.mxu0 0
        %1010 = vmatpush1.bf16.msra.mxu0 %v856
        %1011 = vmatprep.subr.bf16.mxu0 0
        %1012 = vmatpush1.bf16.msra.mxu0 %v853
        %1013 = vmatprep.subr.bf16.mxu0 0
        %1014 = vmatpush1.bf16.msra.mxu0 %v850
        %1015 = vmatprep.subr.bf16.mxu0 0
        %1016 = vmatpush1.bf16.msra.mxu0 %v847
        %1017 = vmatprep.subr.bf16.mxu0 0
        %1018 = vmatpush1.bf16.msra.mxu0 %v844
        %1019 = vmatprep.subr.bf16.mxu0 0
        %1020 = vmatpush2.bf16.msra.mxu0 0
        %1021 = vmatprep.subr.bf16.mxu0 0
        %1022 = vmatpush2.bf16.msra.mxu0 0
        %1023 = vmatprep.subr.bf16.mxu0 0
        %1024 = vmatpush2.bf16.msra.mxu0 0
        %1025 = vmatprep.subr.bf16.mxu0 0
        %1026 = vmatpush2.bf16.msra.mxu0 0
        %1027 = vmatprep.subr.bf16.mxu0 0
        %1028 = vmatpush2.bf16.msra.mxu0 0
        %1029 = vmatprep.subr.bf16.mxu0 0
        %1030 = vmatpush2.bf16.msra.mxu0 0
        %1031 = vmatprep.subr.bf16.mxu0 0
        %1032 = vmatpush2.bf16.msra.mxu0 0
        %1033 = vmatprep.subr.bf16.mxu0 0
        %1034 = vmatpush2.bf16.msra.mxu0 0
        %1035 = vmatprep.mubr.bf16.mxu0 0
        %1036 = vmatmul.mubr.bf16.gmra.mxu0 %v722
        %v1037 = vpop.f32.mrf.mxu0
        %v1038 = vadd.f32 0.0, %v1037
        %v1039 = vpop.f32.mrf.mxu0
        %v1040 = vpop.f32.mrf.mxu0
        %v1041 = vadd.f32 0.0, %v1040
        %v1042 = vpop.f32.mrf.mxu0
        %1043 = vmatprep.mubr.bf16.mxu0 0
        %1044 = vmatmul.mubr.bf16.gmra.mxu0 %v723
        %v1045 = vpop.f32.mrf.mxu0
        %v1046 = vadd.f32 0.0, %v1045
        %v1047 = vpop.f32.mrf.mxu0
        %v1048 = vpop.f32.mrf.mxu0
        %v1049 = vadd.f32 0.0, %v1048
        %v1050 = vpop.f32.mrf.mxu0
        %1051 = vmatprep.mubr.bf16.mxu0 0
        %1052 = vmatmul.mubr.bf16.gmra.mxu0 %v724
        %v1053 = vpop.f32.mrf.mxu0
        %v1054 = vadd.f32 0.0, %v1053
        %v1055 = vpop.f32.mrf.mxu0
        %v1056 = vpop.f32.mrf.mxu0
        %v1057 = vadd.f32 0.0, %v1056
        %v1058 = vpop.f32.mrf.mxu0
        %1059 = vmatprep.mubr.bf16.mxu0 0
        %1060 = vmatmul.mubr.bf16.gmra.mxu0 %v725
        %v1061 = vpop.f32.mrf.mxu0
        %v1062 = vadd.f32 0.0, %v1061
        %v1063 = vpop.f32.mrf.mxu0
        %v1064 = vpop.f32.mrf.mxu0
        %v1065 = vadd.f32 0.0, %v1064
        %v1066 = vpop.f32.mrf.mxu0
        %1067 = vmatprep.mubr.bf16.mxu0 0
        %1068 = vmatmul.mubr.bf16.gmra.mxu0 %v726
        %v1069 = vpop.f32.mrf.mxu0
        %v1070 = vadd.f32 0.0, %v1069
        %v1071 = vpop.f32.mrf.mxu0
        %v1072 = vpop.f32.mrf.mxu0
        %v1073 = vadd.f32 0.0, %v1072
        %v1074 = vpop.f32.mrf.mxu0
        %1075 = vmatprep.mubr.bf16.mxu0 0
        %1076 = vmatmul.mubr.bf16.gmra.mxu0 %v727
        %v1077 = vpop.f32.mrf.mxu0
        %v1078 = vadd.f32 0.0, %v1077
        %v1079 = vpop.f32.mrf.mxu0
        %v1080 = vpop.f32.mrf.mxu0
        %v1081 = vadd.f32 0.0, %v1080
        %v1082 = vpop.f32.mrf.mxu0
        %1083 = vmatprep.mubr.bf16.mxu0 0
        %1084 = vmatmul.mubr.bf16.gmra.mxu0 %v728
        %v1085 = vpop.f32.mrf.mxu0
        %v1086 = vadd.f32 0.0, %v1085
        %v1087 = vpop.f32.mrf.mxu0
        %v1088 = vpop.f32.mrf.mxu0
        %v1089 = vadd.f32 0.0, %v1088
        %v1090 = vpop.f32.mrf.mxu0
        %1091 = vmatprep.mubr.bf16.mxu0 0
        %1092 = vmatmul.mubr.bf16.gmra.mxu0 %v729
        %v1093 = vpop.f32.mrf.mxu0
        %v1094 = vadd.f32 0.0, %v1093
        %v1095 = vpop.f32.mrf.mxu0
        %v1096 = vpop.f32.mrf.mxu0
        %v1097 = vadd.f32 0.0, %v1096
        %v1098 = vpop.f32.mrf.mxu0
        %1099 = vdwg.mxu0
        %v1100 = vadd.f32 %v547, %v925
        %v1101 = vadd.f32 %v549, %v927
        %v1102 = vadd.f32 %v551, %v929
        %v1103 = vadd.f32 %v553, %v931
        %v1104 = vadd.f32 %v557, %v935
        %v1105 = vadd.f32 %v559, %v937
        %v1106 = vadd.f32 %v561, %v939
        %v1107 = vadd.f32 %v563, %v941
        %v1108 = vadd.f32 %v567, %v945
        %v1109 = vadd.f32 %v569, %v947
        %v1110 = vadd.f32 %v571, %v949
        %v1111 = vadd.f32 %v573, %v951
        %v1112 = vadd.f32 %v577, %v955
        %v1113 = vadd.f32 %v579, %v957
        %v1114 = vadd.f32 %v581, %v959
        %v1115 = vadd.f32 %v583, %v961
        %v1116 = vadd.f32 %v587, %v965
        %v1117 = vadd.f32 %v589, %v967
        %v1118 = vadd.f32 %v591, %v969
        %v1119 = vadd.f32 %v593, %v971
        %v1120 = vadd.f32 %v597, %v975
        %v1121 = vadd.f32 %v599, %v977
        %v1122 = vadd.f32 %v601, %v979
        %v1123 = vadd.f32 %v603, %v981
        %v1124 = vadd.f32 %v607, %v985
        %v1125 = vadd.f32 %v609, %v987
        %v1126 = vadd.f32 %v611, %v989
        %v1127 = vadd.f32 %v613, %v991
        %v1128 = vadd.f32 %v617, %v995
        %v1129 = vadd.f32 %v619, %v997
        %v1130 = vadd.f32 %v621, %v999
        %v1131 = vadd.f32 %v623, %v1001
        %v1132 = vxor.u32 %v1100, 2147483648
        %v1133 = vxor.u32 %v1101, 2147483648
        %v1134 = vxor.u32 %v1102, 2147483648
        %v1135 = vxor.u32 %v1103, 2147483648
        %v1136 = vxor.u32 %v1104, 2147483648
        %v1137 = vxor.u32 %v1105, 2147483648
        %v1138 = vxor.u32 %v1106, 2147483648
        %v1139 = vxor.u32 %v1107, 2147483648
        %v1140 = vxor.u32 %v1108, 2147483648
        %v1141 = vxor.u32 %v1109, 2147483648
        %v1142 = vxor.u32 %v1110, 2147483648
        %v1143 = vxor.u32 %v1111, 2147483648
        %v1144 = vxor.u32 %v1112, 2147483648
        %v1145 = vxor.u32 %v1113, 2147483648
        %v1146 = vxor.u32 %v1114, 2147483648
        %v1147 = vxor.u32 %v1115, 2147483648
        %v1148 = vxor.u32 %v1116, 2147483648
        %v1149 = vxor.u32 %v1117, 2147483648
        %v1150 = vxor.u32 %v1118, 2147483648
        %v1151 = vxor.u32 %v1119, 2147483648
        %v1152 = vxor.u32 %v1120, 2147483648
        %v1153 = vxor.u32 %v1121, 2147483648
        %v1154 = vxor.u32 %v1122, 2147483648
        %v1155 = vxor.u32 %v1123, 2147483648
        %v1156 = vxor.u32 %v1124, 2147483648
        %v1157 = vxor.u32 %v1125, 2147483648
        %v1158 = vxor.u32 %v1126, 2147483648
        %v1159 = vxor.u32 %v1127, 2147483648
        %v1160 = vxor.u32 %v1128, 2147483648
        %v1161 = vxor.u32 %v1129, 2147483648
        %v1162 = vxor.u32 %v1130, 2147483648
        %v1163 = vxor.u32 %v1131, 2147483648
        %v1164 = vmul.f32 %v1132, 1.442695
        %v1165 = vpow.pop %v1164
        %v1166 = vmul.f32 %v1133, 1.442695
        %v1167 = vpow.pop %v1166
        %v1168 = vmul.f32 %v1134, 1.442695
        %v1169 = vpow.pop %v1168
        %v1170 = vmul.f32 %v1135, 1.442695
        %v1171 = vpow.pop %v1170
        %v1172 = vmul.f32 %v1136, 1.442695
        %v1173 = vpow.pop %v1172
        %v1174 = vmul.f32 %v1137, 1.442695
        %v1175 = vpow.pop %v1174
        %v1176 = vmul.f32 %v1138, 1.442695
        %v1177 = vpow.pop %v1176
        %v1178 = vmul.f32 %v1139, 1.442695
        %v1179 = vpow.pop %v1178
        %v1180 = vmul.f32 %v1140, 1.442695
        %v1181 = vpow.pop %v1180
        %v1182 = vmul.f32 %v1141, 1.442695
        %v1183 = vpow.pop %v1182
        %v1184 = vmul.f32 %v1142, 1.442695
        %v1185 = vpow.pop %v1184
        %v1186 = vmul.f32 %v1143, 1.442695
        %v1187 = vpow.pop %v1186
        %v1188 = vmul.f32 %v1144, 1.442695
        %v1189 = vpow.pop %v1188
        %v1190 = vmul.f32 %v1145, 1.442695
        %v1191 = vpow.pop %v1190
        %v1192 = vmul.f32 %v1146, 1.442695
        %v1193 = vpow.pop %v1192
        %v1194 = vmul.f32 %v1147, 1.442695
        %v1195 = vpow.pop %v1194
        %v1196 = vmul.f32 %v1148, 1.442695
        %v1197 = vpow.pop %v1196
        %v1198 = vmul.f32 %v1149, 1.442695
        %v1199 = vpow.pop %v1198
        %v1200 = vmul.f32 %v1150, 1.442695
        %v1201 = vpow.pop %v1200
        %v1202 = vmul.f32 %v1151, 1.442695
        %v1203 = vpow.pop %v1202
        %v1204 = vmul.f32 %v1152, 1.442695
        %v1205 = vpow.pop %v1204
        %v1206 = vmul.f32 %v1153, 1.442695
        %v1207 = vpow.pop %v1206
        %v1208 = vmul.f32 %v1154, 1.442695
        %v1209 = vpow.pop %v1208
        %v1210 = vmul.f32 %v1155, 1.442695
        %v1211 = vpow.pop %v1210
        %v1212 = vmul.f32 %v1156, 1.442695
        %v1213 = vpow.pop %v1212
        %v1214 = vmul.f32 %v1157, 1.442695
        %v1215 = vpow.pop %v1214
        %v1216 = vmul.f32 %v1158, 1.442695
        %v1217 = vpow.pop %v1216
        %v1218 = vmul.f32 %v1159, 1.442695
        %v1219 = vpow.pop %v1218
        %v1220 = vmul.f32 %v1160, 1.442695
        %v1221 = vpow.pop %v1220
        %v1222 = vmul.f32 %v1161, 1.442695
        %v1223 = vpow.pop %v1222
        %v1224 = vmul.f32 %v1162, 1.442695
        %v1225 = vpow.pop %v1224
        %v1226 = vmul.f32 %v1163, 1.442695
        %v1227 = vpow.pop %v1226
        %v1228 = vadd.f32 %v1165, 1.0
        %v1229 = vadd.f32 %v1167, 1.0
        %v1230 = vadd.f32 %v1169, 1.0
        %v1231 = vadd.f32 %v1171, 1.0
        %v1232 = vadd.f32 %v1173, 1.0
        %v1233 = vadd.f32 %v1175, 1.0
        %v1234 = vadd.f32 %v1177, 1.0
        %v1235 = vadd.f32 %v1179, 1.0
        %v1236 = vadd.f32 %v1181, 1.0
        %v1237 = vadd.f32 %v1183, 1.0
        %v1238 = vadd.f32 %v1185, 1.0
        %v1239 = vadd.f32 %v1187, 1.0
        %v1240 = vadd.f32 %v1189, 1.0
        %v1241 = vadd.f32 %v1191, 1.0
        %v1242 = vadd.f32 %v1193, 1.0
        %v1243 = vadd.f32 %v1195, 1.0
        %v1244 = vadd.f32 %v1197, 1.0
        %v1245 = vadd.f32 %v1199, 1.0
        %v1246 = vadd.f32 %v1201, 1.0
        %v1247 = vadd.f32 %v1203, 1.0
        %v1248 = vadd.f32 %v1205, 1.0
        %v1249 = vadd.f32 %v1207, 1.0
        %v1250 = vadd.f32 %v1209, 1.0
        %v1251 = vadd.f32 %v1211, 1.0
        %v1252 = vadd.f32 %v1213, 1.0
        %v1253 = vadd.f32 %v1215, 1.0
        %v1254 = vadd.f32 %v1217, 1.0
        %v1255 = vadd.f32 %v1219, 1.0
        %v1256 = vadd.f32 %v1221, 1.0
        %v1257 = vadd.f32 %v1223, 1.0
        %v1258 = vadd.f32 %v1225, 1.0
        %v1259 = vadd.f32 %v1227, 1.0
        %v1260 = vrcp.pop %v1228
        %v1261 = vmul.f32 1.0, %v1260
        %v1262 = vrcp.pop %v1229
        %v1263 = vmul.f32 1.0, %v1262
        %v1264 = vrcp.pop %v1230
        %v1265 = vmul.f32 1.0, %v1264
        %v1266 = vrcp.pop %v1231
        %v1267 = vmul.f32 1.0, %v1266
        %v1268 = vrcp.pop %v1232
        %v1269 = vmul.f32 1.0, %v1268
        %v1270 = vrcp.pop %v1233
        %v1271 = vmul.f32 1.0, %v1270
        %v1272 = vrcp.pop %v1234
        %v1273 = vmul.f32 1.0, %v1272
        %v1274 = vrcp.pop %v1235
        %v1275 = vmul.f32 1.0, %v1274
        %v1276 = vrcp.pop %v1236
        %v1277 = vmul.f32 1.0, %v1276
        %v1278 = vrcp.pop %v1237
        %v1279 = vmul.f32 1.0, %v1278
        %v1280 = vrcp.pop %v1238
        %v1281 = vmul.f32 1.0, %v1280
        %v1282 = vrcp.pop %v1239
        %v1283 = vmul.f32 1.0, %v1282
        %v1284 = vrcp.pop %v1240
        %v1285 = vmul.f32 1.0, %v1284
        %v1286 = vrcp.pop %v1241
        %v1287 = vmul.f32 1.0, %v1286
        %v1288 = vrcp.pop %v1242
        %v1289 = vmul.f32 1.0, %v1288
        %v1290 = vrcp.pop %v1243
        %v1291 = vmul.f32 1.0, %v1290
        %v1292 = vrcp.pop %v1244
        %v1293 = vmul.f32 1.0, %v1292
        %v1294 = vrcp.pop %v1245
        %v1295 = vmul.f32 1.0, %v1294
        %v1296 = vrcp.pop %v1246
        %v1297 = vmul.f32 1.0, %v1296
        %v1298 = vrcp.pop %v1247
        %v1299 = vmul.f32 1.0, %v1298
        %v1300 = vrcp.pop %v1248
        %v1301 = vmul.f32 1.0, %v1300
        %v1302 = vrcp.pop %v1249
        %v1303 = vmul.f32 1.0, %v1302
        %v1304 = vrcp.pop %v1250
        %v1305 = vmul.f32 1.0, %v1304
        %v1306 = vrcp.pop %v1251
        %v1307 = vmul.f32 1.0, %v1306
        %v1308 = vrcp.pop %v1252
        %v1309 = vmul.f32 1.0, %v1308
        %v1310 = vrcp.pop %v1253
        %v1311 = vmul.f32 1.0, %v1310
        %v1312 = vrcp.pop %v1254
        %v1313 = vmul.f32 1.0, %v1312
        %v1314 = vrcp.pop %v1255
        %v1315 = vmul.f32 1.0, %v1314
        %v1316 = vrcp.pop %v1256
        %v1317 = vmul.f32 1.0, %v1316
        %v1318 = vrcp.pop %v1257
        %v1319 = vmul.f32 1.0, %v1318
        %v1320 = vrcp.pop %v1258
        %v1321 = vmul.f32 1.0, %v1320
        %v1322 = vrcp.pop %v1259
        %v1323 = vmul.f32 1.0, %v1322
        %v1324 = vld [vmem:[%s4] sm:$0x1]
        %v1326 = vlaneseq
        %v1327 = vshrl.u32 %v1326, 7
        %v1328 = vsub.s32 0, %v1327
        %v1329 = vrot.slane %v1324, %v1328
        %v1331 = vadd.f32 %v1038, %v1329
        %v1332 = vadd.f32 %v1041, %v1329
        %v1333 = vadd.f32 %v1046, %v1329
        %v1334 = vadd.f32 %v1049, %v1329
        %v1335 = vadd.f32 %v1054, %v1329
        %v1336 = vadd.f32 %v1057, %v1329
        %v1337 = vadd.f32 %v1062, %v1329
        %v1338 = vadd.f32 %v1065, %v1329
        %v1339 = vadd.f32 %v1070, %v1329
        %v1340 = vadd.f32 %v1073, %v1329
        %v1341 = vadd.f32 %v1078, %v1329
        %v1342 = vadd.f32 %v1081, %v1329
        %v1343 = vadd.f32 %v1086, %v1329
        %v1344 = vadd.f32 %v1089, %v1329
        %v1345 = vadd.f32 %v1094, %v1329
        %v1346 = vadd.f32 %v1097, %v1329
        %v1347 = vmul.f32 %v1261, %v1331
        %v1348 = vmul.f32 %v1265, %v1332
        %v1349 = vmul.f32 %v1269, %v1333
        %v1350 = vmul.f32 %v1273, %v1334
        %v1351 = vmul.f32 %v1277, %v1335
        %v1352 = vmul.f32 %v1281, %v1336
        %v1353 = vmul.f32 %v1285, %v1337
        %v1354 = vmul.f32 %v1289, %v1338
        %v1355 = vmul.f32 %v1293, %v1339
        %v1356 = vmul.f32 %v1297, %v1340
        %v1357 = vmul.f32 %v1301, %v1341
        %v1358 = vmul.f32 %v1305, %v1342
        %v1359 = vmul.f32 %v1309, %v1343
        %v1360 = vmul.f32 %v1313, %v1344
        %v1361 = vmul.f32 %v1317, %v1345
        %v1362 = vmul.f32 %v1321, %v1346
        %v1363 = vadd.f32 %v660, %v1347
        %v1364 = vadd.f32 %v663, %v1348
        %v1365 = vadd.f32 %v668, %v1349
        %v1366 = vadd.f32 %v671, %v1350
        %v1367 = vadd.f32 %v676, %v1351
        %v1368 = vadd.f32 %v679, %v1352
        %v1369 = vadd.f32 %v684, %v1353
        %v1370 = vadd.f32 %v687, %v1354
        %v1371 = vadd.f32 %v692, %v1355
        %v1372 = vadd.f32 %v695, %v1356
        %v1373 = vadd.f32 %v700, %v1357
        %v1374 = vadd.f32 %v703, %v1358
        %v1375 = vadd.f32 %v708, %v1359
        %v1376 = vadd.f32 %v711, %v1360
        %v1377 = vadd.f32 %v716, %v1361
        %v1378 = vadd.f32 %v719, %v1362
        %v1379 = vtanh.pop %v1363
        %v1380 = vtanh.pop %v1364
        %v1381 = vtanh.pop %v1365
        %v1382 = vtanh.pop %v1366
        %v1383 = vtanh.pop %v1367
        %v1384 = vtanh.pop %v1368
        %v1385 = vtanh.pop %v1369
        %v1386 = vtanh.pop %v1370
        %v1387 = vtanh.pop %v1371
        %v1388 = vtanh.pop %v1372
        %v1389 = vtanh.pop %v1373
        %v1390 = vtanh.pop %v1374
        %v1391 = vtanh.pop %v1375
        %v1392 = vtanh.pop %v1376
        %v1393 = vtanh.pop %v1377
        %v1394 = vtanh.pop %v1378
        %v1395 = vsub.f32 1.0, %v1263
        %v1396 = vsub.f32 1.0, %v1267
        %v1397 = vsub.f32 1.0, %v1271
        %v1398 = vsub.f32 1.0, %v1275
        %v1399 = vsub.f32 1.0, %v1279
        %v1400 = vsub.f32 1.0, %v1283
        %v1401 = vsub.f32 1.0, %v1287
        %v1402 = vsub.f32 1.0, %v1291
        %v1403 = vsub.f32 1.0, %v1295
        %v1404 = vsub.f32 1.0, %v1299
        %v1405 = vsub.f32 1.0, %v1303
        %v1406 = vsub.f32 1.0, %v1307
        %v1407 = vsub.f32 1.0, %v1311
        %v1408 = vsub.f32 1.0, %v1315
        %v1409 = vsub.f32 1.0, %v1319
        %v1410 = vsub.f32 1.0, %v1323
        %v1411 = vmul.f32 %v1395, %v1379
        %v1412 = vmul.f32 %v1396, %v1380
        %v1413 = vmul.f32 %v1397, %v1381
        %v1414 = vmul.f32 %v1398, %v1382
        %v1415 = vmul.f32 %v1399, %v1383
        %v1416 = vmul.f32 %v1400, %v1384
        %v1417 = vmul.f32 %v1401, %v1385
        %v1418 = vmul.f32 %v1402, %v1386
        %v1419 = vmul.f32 %v1403, %v1387
        %v1420 = vmul.f32 %v1404, %v1388
        %v1421 = vmul.f32 %v1405, %v1389
        %v1422 = vmul.f32 %v1406, %v1390
        %v1423 = vmul.f32 %v1407, %v1391
        %v1424 = vmul.f32 %v1408, %v1392
        %v1425 = vmul.f32 %v1409, %v1393
        %v1426 = vmul.f32 %v1410, %v1394
        %v1427 = vmul.f32 %v1263, %v406
        %v1428 = vmul.f32 %v1267, %v407
        %v1429 = vmul.f32 %v1271, %v408
        %v1430 = vmul.f32 %v1275, %v409
        %v1431 = vmul.f32 %v1279, %v410
        %v1432 = vmul.f32 %v1283, %v411
        %v1433 = vmul.f32 %v1287, %v412
        %v1434 = vmul.f32 %v1291, %v413
        %v1435 = vmul.f32 %v1295, %v414
        %v1436 = vmul.f32 %v1299, %v415
        %v1437 = vmul.f32 %v1303, %v416
        %v1438 = vmul.f32 %v1307, %v417
        %v1439 = vmul.f32 %v1311, %v418
        %v1440 = vmul.f32 %v1315, %v419
        %v1441 = vmul.f32 %v1319, %v420
        %v1442 = vmul.f32 %v1323, %v421
        %v1443 = vadd.f32 %v1411, %v1427
        %v1444 = vadd.f32 %v1412, %v1428
        %v1445 = vadd.f32 %v1413, %v1429
        %v1446 = vadd.f32 %v1414, %v1430
        %v1447 = vadd.f32 %v1415, %v1431
        %v1448 = vadd.f32 %v1416, %v1432
        %v1449 = vadd.f32 %v1417, %v1433
        %v1450 = vadd.f32 %v1418, %v1434
        %v1451 = vadd.f32 %v1419, %v1435
        %v1452 = vadd.f32 %v1420, %v1436
        %v1453 = vadd.f32 %v1421, %v1437
        %v1454 = vadd.f32 %v1422, %v1438
        %v1455 = vadd.f32 %v1423, %v1439
        %v1456 = vadd.f32 %v1424, %v1440
        %v1457 = vadd.f32 %v1425, %v1441
        %v1458 = vadd.f32 %v1426, %v1442
        %1459 = vst [vmem:[#allocation2] sm:$0xff] %v1443
        %1460 = vst [vmem:[#allocation2 + $0x8] sm:$0xff] %v1444
        %1461 = vst [vmem:[#allocation2 + $0x10] sm:$0xff] %v1445
        %1462 = vst [vmem:[#allocation2 + $0x18] sm:$0xff] %v1446
        %1463 = vst [vmem:[#allocation2 + $0x20] sm:$0xff] %v1447
        %1464 = vst [vmem:[#allocation2 + $0x28] sm:$0xff] %v1448
        %1465 = vst [vmem:[#allocation2 + $0x30] sm:$0xff] %v1449
        %1466 = vst [vmem:[#allocation2 + $0x38] sm:$0xff] %v1450
        %1467 = vst [vmem:[#allocation2 + $0x40] sm:$0xff] %v1451
        %1468 = vst [vmem:[#allocation2 + $0x48] sm:$0xff] %v1452
        %1469 = vst [vmem:[#allocation2 + $0x50] sm:$0xff] %v1453
        %1470 = vst [vmem:[#allocation2 + $0x58] sm:$0xff] %v1454
        %1471 = vst [vmem:[#allocation2 + $0x60] sm:$0xff] %v1455
        %1472 = vst [vmem:[#allocation2 + $0x68] sm:$0xff] %v1456
        %1473 = vst [vmem:[#allocation2 + $0x70] sm:$0xff] %v1457
        %1474 = vst [vmem:[#allocation2 + $0x78] sm:$0xff] %v1458
        %s1475 = scalar_lea.vmem [#allocation2], 128
        %v1476 = vld [vmem:[%s1475] sm:$0xff]
        %v1477 = vld [vmem:[%s1475 + $0x8] sm:$0xff]
        %v1478 = vld [vmem:[%s1475 + $0x10] sm:$0xff]
        %v1479 = vld [vmem:[%s1475 + $0x18] sm:$0xff]
        %v1480 = vld [vmem:[%s1475 + $0x20] sm:$0xff]
        %v1481 = vld [vmem:[%s1475 + $0x28] sm:$0xff]
        %v1482 = vld [vmem:[%s1475 + $0x30] sm:$0xff]
        %v1483 = vld [vmem:[%s1475 + $0x38] sm:$0xff]
        %v1484 = vld [vmem:[%s1475 + $0x40] sm:$0xff]
        %v1485 = vld [vmem:[%s1475 + $0x48] sm:$0xff]
        %v1486 = vld [vmem:[%s1475 + $0x50] sm:$0xff]
        %v1487 = vld [vmem:[%s1475 + $0x58] sm:$0xff]
        %v1488 = vld [vmem:[%s1475 + $0x60] sm:$0xff]
        %v1489 = vld [vmem:[%s1475 + $0x68] sm:$0xff]
        %v1490 = vld [vmem:[%s1475 + $0x70] sm:$0xff]
        %v1491 = vld [vmem:[%s1475 + $0x78] sm:$0xff]
        %v1492 = vpack.c.bf16 %v1444, %v1443
        %v1493 = vpack.c.bf16 %v1446, %v1445
        %v1494 = vpack.c.bf16 %v1448, %v1447
        %v1495 = vpack.c.bf16 %v1450, %v1449
        %v1496 = vpack.c.bf16 %v1452, %v1451
        %v1497 = vpack.c.bf16 %v1454, %v1453
        %v1498 = vpack.c.bf16 %v1456, %v1455
        %v1499 = vpack.c.bf16 %v1458, %v1457
        %v1500 = vld [vmem:[%s5] sm:$0xff]
        %v1501 = vld [vmem:[%s5 + $0x8] sm:$0xf]
        %v1502 = vld [vmem:[%s5 + $0xc] sm:$0xff]
        %v1503 = vld [vmem:[%s5 + $0x14] sm:$0xf]
        %v1504 = vld [vmem:[%s5 + $0x18] sm:$0xff]
        %v1505 = vld [vmem:[%s5 + $0x20] sm:$0xf]
        %v1506 = vld [vmem:[%s5 + $0x24] sm:$0xff]
        %v1507 = vld [vmem:[%s5 + $0x2c] sm:$0xf]
        %v1508 = vld [vmem:[%s5 + $0x30] sm:$0xff]
        %v1509 = vld [vmem:[%s5 + $0x38] sm:$0xf]
        %v1510 = vld [vmem:[%s5 + $0x3c] sm:$0xff]
        %v1511 = vld [vmem:[%s5 + $0x44] sm:$0xf]
        %v1512 = vld [vmem:[%s5 + $0x48] sm:$0xff]
        %v1513 = vld [vmem:[%s5 + $0x50] sm:$0xf]
        %v1514 = vld [vmem:[%s5 + $0x54] sm:$0xff]
        %v1515 = vld [vmem:[%s5 + $0x5c] sm:$0xf]
        %v1516 = vld [vmem:[%s5 + $0x60] sm:$0xff]
        %v1517 = vld [vmem:[%s5 + $0x68] sm:$0xf]
        %v1518 = vld [vmem:[%s5 + $0x6c] sm:$0xff]
        %v1519 = vld [vmem:[%s5 + $0x74] sm:$0xf]
        %v1520 = vld [vmem:[%s5 + $0x78] sm:$0xff]
        %v1521 = vld [vmem:[%s5 + $0x80] sm:$0xf]
        %v1522 = vld [vmem:[%s5 + $0x84] sm:$0xff]
        %v1523 = vld [vmem:[%s5 + $0x8c] sm:$0xf]
        %v1524 = vld [vmem:[%s5 + $0x90] sm:$0xff]
        %v1525 = vld [vmem:[%s5 + $0x98] sm:$0xf]
        %v1526 = vld [vmem:[%s5 + $0x9c] sm:$0xff]
        %v1527 = vld [vmem:[%s5 + $0xa4] sm:$0xf]
        %v1528 = vld [vmem:[%s5 + $0xa8] sm:$0xff]
        %v1529 = vld [vmem:[%s5 + $0xb0] sm:$0xf]
        %v1530 = vld [vmem:[%s5 + $0xb4] sm:$0xff]
        %v1531 = vld [vmem:[%s5 + $0xbc] sm:$0xf]
        %v1532 = vld [vmem:[%s7] sm:$0x7]
        %v1534 = vlaneseq
        %v1535 = vshrl.u32 %v1534, 7
        %v1536 = vsub.s32 0, %v1535
        %v1537 = vrot.slane %v1532, %v1536
        %v1538 = vlaneseq
        %v1539 = vshrl.u32 %v1538, 7
        %v1540 = vsub.s32 1, %v1539
        %v1541 = vrot.slane %v1532, %v1540
        %v1542 = vlaneseq
        %v1543 = vshrl.u32 %v1542, 7
        %v1544 = vsub.s32 2, %v1543
        %v1545 = vrot.slane %v1532, %v1544
        %v1581 = vunpack.c.l.b16 %v1500
        %v1582 = vunpack.c.h.b16 %v1500
        %v1583 = vunpack.c.l.b16 %v1501
        %v1584 = vunpack.c.l.b16 %v1502
        %v1585 = vunpack.c.h.b16 %v1502
        %v1586 = vunpack.c.l.b16 %v1503
        %v1587 = vunpack.c.l.b16 %v1504
        %v1588 = vunpack.c.h.b16 %v1504
        %v1589 = vunpack.c.l.b16 %v1505
        %v1590 = vunpack.c.l.b16 %v1506
        %v1591 = vunpack.c.h.b16 %v1506
        %v1592 = vunpack.c.l.b16 %v1507
        %v1593 = vunpack.c.l.b16 %v1508
        %v1594 = vunpack.c.h.b16 %v1508
        %v1595 = vunpack.c.l.b16 %v1509
        %v1596 = vunpack.c.l.b16 %v1510
        %v1597 = vunpack.c.h.b16 %v1510
        %v1598 = vunpack.c.l.b16 %v1511
        %v1599 = vunpack.c.l.b16 %v1512
        %v1600 = vunpack.c.h.b16 %v1512
        %v1601 = vunpack.c.l.b16 %v1513
        %v1602 = vunpack.c.l.b16 %v1514
        %v1603 = vunpack.c.h.b16 %v1514
        %v1604 = vunpack.c.l.b16 %v1515
        %v1605 = vunpack.c.l.b16 %v1516
        %v1606 = vunpack.c.h.b16 %v1516
        %v1607 = vunpack.c.l.b16 %v1517
        %v1608 = vunpack.c.l.b16 %v1518
        %v1609 = vunpack.c.h.b16 %v1518
        %v1610 = vunpack.c.l.b16 %v1519
        %v1611 = vunpack.c.l.b16 %v1520
        %v1612 = vunpack.c.h.b16 %v1520
        %v1613 = vunpack.c.l.b16 %v1521
        %v1614 = vunpack.c.l.b16 %v1522
        %v1615 = vunpack.c.h.b16 %v1522
        %v1616 = vunpack.c.l.b16 %v1523
        %v1617 = vunpack.c.l.b16 %v1524
        %v1618 = vunpack.c.h.b16 %v1524
        %v1619 = vunpack.c.l.b16 %v1525
        %v1620 = vunpack.c.l.b16 %v1526
        %v1621 = vunpack.c.h.b16 %v1526
        %v1622 = vunpack.c.l.b16 %v1527
        %v1623 = vunpack.c.l.b16 %v1528
        %v1624 = vunpack.c.h.b16 %v1528
        %v1625 = vunpack.c.l.b16 %v1529
        %v1626 = vunpack.c.l.b16 %v1530
        %v1627 = vunpack.c.h.b16 %v1530
        %v1628 = vunpack.c.l.b16 %v1531
        %v1629 = vpack.c.b16 %v1584, %v1581
        %v1630 = vpack.c.b16 %v1585, %v1582
        %v1631 = vpack.c.b16 %v1586, %v1583
        %v1632 = vpack.c.b16 %v1590, %v1587
        %v1633 = vpack.c.b16 %v1591, %v1588
        %v1634 = vpack.c.b16 %v1592, %v1589
        %v1635 = vpack.c.b16 %v1596, %v1593
        %v1636 = vpack.c.b16 %v1597, %v1594
        %v1637 = vpack.c.b16 %v1598, %v1595
        %v1638 = vpack.c.b16 %v1602, %v1599
        %v1639 = vpack.c.b16 %v1603, %v1600
        %v1640 = vpack.c.b16 %v1604, %v1601
        %v1641 = vpack.c.b16 %v1608, %v1605
        %v1642 = vpack.c.b16 %v1609, %v1606
        %v1643 = vpack.c.b16 %v1610, %v1607
        %v1644 = vpack.c.b16 %v1614, %v1611
        %v1645 = vpack.c.b16 %v1615, %v1612
        %v1646 = vpack.c.b16 %v1616, %v1613
        %v1647 = vpack.c.b16 %v1620, %v1617
        %v1648 = vpack.c.b16 %v1621, %v1618
        %v1649 = vpack.c.b16 %v1622, %v1619
        %v1650 = vpack.c.b16 %v1626, %v1623
        %v1651 = vpack.c.b16 %v1627, %v1624
        %v1652 = vpack.c.b16 %v1628, %v1625
        %1677 = vmatprep.subr.bf16.mxu0 %v1651
        %1678 = vmatpush1.bf16.msra.mxu0 %v1650
        %1679 = vmatprep.subr.bf16.mxu0 %v1648
        %1680 = vmatpush1.bf16.msra.mxu0 %v1647
        %1681 = vmatprep.subr.bf16.mxu0 %v1645
        %1682 = vmatpush1.bf16.msra.mxu0 %v1644
        %1683 = vmatprep.subr.bf16.mxu0 %v1642
        %1684 = vmatpush1.bf16.msra.mxu0 %v1641
        %1685 = vmatprep.subr.bf16.mxu0 %v1639
        %1686 = vmatpush1.bf16.msra.mxu0 %v1638
        %1687 = vmatprep.subr.bf16.mxu0 %v1636
        %1688 = vmatpush1.bf16.msra.mxu0 %v1635
        %1689 = vmatprep.subr.bf16.mxu0 %v1633
        %1690 = vmatpush1.bf16.msra.mxu0 %v1632
        %1691 = vmatprep.subr.bf16.mxu0 %v1630
        %1692 = vmatpush1.bf16.msra.mxu0 %v1629
        %1693 = vmatprep.subr.bf16.mxu0 0
        %1694 = vmatpush2.bf16.msra.mxu0 0
        %1695 = vmatprep.subr.bf16.mxu0 0
        %1696 = vmatpush2.bf16.msra.mxu0 0
        %1697 = vmatprep.subr.bf16.mxu0 0
        %1698 = vmatpush2.bf16.msra.mxu0 0
        %1699 = vmatprep.subr.bf16.mxu0 0
        %1700 = vmatpush2.bf16.msra.mxu0 0
        %1701 = vmatprep.subr.bf16.mxu0 0
        %1702 = vmatpush2.bf16.msra.mxu0 0
        %1703 = vmatprep.subr.bf16.mxu0 0
        %1704 = vmatpush2.bf16.msra.mxu0 0
        %1705 = vmatprep.subr.bf16.mxu0 0
        %1706 = vmatpush2.bf16.msra.mxu0 0
        %1707 = vmatprep.subr.bf16.mxu0 0
        %1708 = vmatpush2.bf16.msra.mxu0 0
        %1709 = vmatprep.mubr.bf16.mxu0 0
        %1710 = vmatmul.mubr.bf16.gmra.mxu0 %v1492
        %v1711 = vpop.f32.mrf.mxu0
        %v1712 = vadd.f32 %v1537, %v1711
        %v1713 = vpop.f32.mrf.mxu0
        %v1714 = vadd.f32 %v1541, %v1713
        %v1715 = vpop.f32.mrf.mxu0
        %v1716 = vadd.f32 %v1537, %v1715
        %v1717 = vpop.f32.mrf.mxu0
        %v1718 = vadd.f32 %v1541, %v1717
        %1719 = vmatprep.mubr.bf16.mxu0 0
        %1720 = vmatmul.mubr.bf16.gmra.mxu0 %v1493
        %v1721 = vpop.f32.mrf.mxu0
        %v1722 = vadd.f32 %v1537, %v1721
        %v1723 = vpop.f32.mrf.mxu0
        %v1724 = vadd.f32 %v1541, %v1723
        %v1725 = vpop.f32.mrf.mxu0
        %v1726 = vadd.f32 %v1537, %v1725
        %v1727 = vpop.f32.mrf.mxu0
        %v1728 = vadd.f32 %v1541, %v1727
        %1729 = vmatprep.mubr.bf16.mxu0 0
        %1730 = vmatmul.mubr.bf16.gmra.mxu0 %v1494
        %v1731 = vpop.f32.mrf.mxu0
        %v1732 = vadd.f32 %v1537, %v1731
        %v1733 = vpop.f32.mrf.mxu0
        %v1734 = vadd.f32 %v1541, %v1733
        %v1735 = vpop.f32.mrf.mxu0
        %v1736 = vadd.f32 %v1537, %v1735
        %v1737 = vpop.f32.mrf.mxu0
        %v1738 = vadd.f32 %v1541, %v1737
        %1739 = vmatprep.mubr.bf16.mxu0 0
        %1740 = vmatmul.mubr.bf16.gmra.mxu0 %v1495
        %v1741 = vpop.f32.mrf.mxu0
        %v1742 = vadd.f32 %v1537, %v1741
        %v1743 = vpop.f32.mrf.mxu0
        %v1744 = vadd.f32 %v1541, %v1743
        %v1745 = vpop.f32.mrf.mxu0
        %v1746 = vadd.f32 %v1537, %v1745
        %v1747 = vpop.f32.mrf.mxu0
        %v1748 = vadd.f32 %v1541, %v1747
        %1749 = vmatprep.mubr.bf16.mxu0 0
        %1750 = vmatmul.mubr.bf16.gmra.mxu0 %v1496
        %v1751 = vpop.f32.mrf.mxu0
        %v1752 = vadd.f32 %v1537, %v1751
        %v1753 = vpop.f32.mrf.mxu0
        %v1754 = vadd.f32 %v1541, %v1753
        %v1755 = vpop.f32.mrf.mxu0
        %v1756 = vadd.f32 %v1537, %v1755
        %v1757 = vpop.f32.mrf.mxu0
        %v1758 = vadd.f32 %v1541, %v1757
        %1759 = vmatprep.mubr.bf16.mxu0 0
        %1760 = vmatmul.mubr.bf16.gmra.mxu0 %v1497
        %v1761 = vpop.f32.mrf.mxu0
        %v1762 = vadd.f32 %v1537, %v1761
        %v1763 = vpop.f32.mrf.mxu0
        %v1764 = vadd.f32 %v1541, %v1763
        %v1765 = vpop.f32.mrf.mxu0
        %v1766 = vadd.f32 %v1537, %v1765
        %v1767 = vpop.f32.mrf.mxu0
        %v1768 = vadd.f32 %v1541, %v1767
        %1769 = vmatprep.mubr.bf16.mxu0 0
        %1770 = vmatmul.mubr.bf16.gmra.mxu0 %v1498
        %v1771 = vpop.f32.mrf.mxu0
        %v1772 = vadd.f32 %v1537, %v1771
        %v1773 = vpop.f32.mrf.mxu0
        %v1774 = vadd.f32 %v1541, %v1773
        %v1775 = vpop.f32.mrf.mxu0
        %v1776 = vadd.f32 %v1537, %v1775
        %v1777 = vpop.f32.mrf.mxu0
        %v1778 = vadd.f32 %v1541, %v1777
        %1779 = vmatprep.mubr.bf16.mxu0 0
        %1780 = vmatmul.mubr.bf16.gmra.mxu0 %v1499
        %v1781 = vpop.f32.mrf.mxu0
        %v1782 = vadd.f32 %v1537, %v1781
        %v1783 = vpop.f32.mrf.mxu0
        %v1784 = vadd.f32 %v1541, %v1783
        %v1785 = vpop.f32.mrf.mxu0
        %v1786 = vadd.f32 %v1537, %v1785
        %v1787 = vpop.f32.mrf.mxu0
        %v1788 = vadd.f32 %v1541, %v1787
        %1789 = vdwg.mxu0
        %1790 = vmatprep.subr.bf16.mxu0 0
        %1791 = vmatpush1.bf16.msra.mxu0 %v1652
        %1792 = vmatprep.subr.bf16.mxu0 0
        %1793 = vmatpush1.bf16.msra.mxu0 %v1649
        %1794 = vmatprep.subr.bf16.mxu0 0
        %1795 = vmatpush1.bf16.msra.mxu0 %v1646
        %1796 = vmatprep.subr.bf16.mxu0 0
        %1797 = vmatpush1.bf16.msra.mxu0 %v1643
        %1798 = vmatprep.subr.bf16.mxu0 0
        %1799 = vmatpush1.bf16.msra.mxu0 %v1640
        %1800 = vmatprep.subr.bf16.mxu0 0
        %1801 = vmatpush1.bf16.msra.mxu0 %v1637
        %1802 = vmatprep.subr.bf16.mxu0 0
        %1803 = vmatpush1.bf16.msra.mxu0 %v1634
        %1804 = vmatprep.subr.bf16.mxu0 0
        %1805 = vmatpush1.bf16.msra.mxu0 %v1631
        %1806 = vmatprep.subr.bf16.mxu0 0
        %1807 = vmatpush2.bf16.msra.mxu0 0
        %1808 = vmatprep.subr.bf16.mxu0 0
        %1809 = vmatpush2.bf16.msra.mxu0 0
        %1810 = vmatprep.subr.bf16.mxu0 0
        %1811 = vmatpush2.bf16.msra.mxu0 0
        %1812 = vmatprep.subr.bf16.mxu0 0
        %1813 = vmatpush2.bf16.msra.mxu0 0
        %1814 = vmatprep.subr.bf16.mxu0 0
        %1815 = vmatpush2.bf16.msra.mxu0 0
        %1816 = vmatprep.subr.bf16.mxu0 0
        %1817 = vmatpush2.bf16.msra.mxu0 0
        %1818 = vmatprep.subr.bf16.mxu0 0
        %1819 = vmatpush2.bf16.msra.mxu0 0
        %1820 = vmatprep.subr.bf16.mxu0 0
        %1821 = vmatpush2.bf16.msra.mxu0 0
        %1822 = vmatprep.mubr.bf16.mxu0 0
        %1823 = vmatmul.mubr.bf16.gmra.mxu0 %v1492
        %v1824 = vpop.f32.mrf.mxu0
        %v1825 = vadd.f32 %v1545, %v1824
        %v1826 = vpop.f32.mrf.mxu0
        %v1827 = vpop.f32.mrf.mxu0
        %v1828 = vadd.f32 %v1545, %v1827
        %v1829 = vpop.f32.mrf.mxu0
        %1830 = vmatprep.mubr.bf16.mxu0 0
        %1831 = vmatmul.mubr.bf16.gmra.mxu0 %v1493
        %v1832 = vpop.f32.mrf.mxu0
        %v1833 = vadd.f32 %v1545, %v1832
        %v1834 = vpop.f32.mrf.mxu0
        %v1835 = vpop.f32.mrf.mxu0
        %v1836 = vadd.f32 %v1545, %v1835
        %v1837 = vpop.f32.mrf.mxu0
        %1838 = vmatprep.mubr.bf16.mxu0 0
        %1839 = vmatmul.mubr.bf16.gmra.mxu0 %v1494
        %v1840 = vpop.f32.mrf.mxu0
        %v1841 = vadd.f32 %v1545, %v1840
        %v1842 = vpop.f32.mrf.mxu0
        %v1843 = vpop.f32.mrf.mxu0
        %v1844 = vadd.f32 %v1545, %v1843
        %v1845 = vpop.f32.mrf.mxu0
        %1846 = vmatprep.mubr.bf16.mxu0 0
        %1847 = vmatmul.mubr.bf16.gmra.mxu0 %v1495
        %v1848 = vpop.f32.mrf.mxu0
        %v1849 = vadd.f32 %v1545, %v1848
        %v1850 = vpop.f32.mrf.mxu0
        %v1851 = vpop.f32.mrf.mxu0
        %v1852 = vadd.f32 %v1545, %v1851
        %v1853 = vpop.f32.mrf.mxu0
        %1854 = vmatprep.mubr.bf16.mxu0 0
        %1855 = vmatmul.mubr.bf16.gmra.mxu0 %v1496
        %v1856 = vpop.f32.mrf.mxu0
        %v1857 = vadd.f32 %v1545, %v1856
        %v1858 = vpop.f32.mrf.mxu0
        %v1859 = vpop.f32.mrf.mxu0
        %v1860 = vadd.f32 %v1545, %v1859
        %v1861 = vpop.f32.mrf.mxu0
        %1862 = vmatprep.mubr.bf16.mxu0 0
        %1863 = vmatmul.mubr.bf16.gmra.mxu0 %v1497
        %v1864 = vpop.f32.mrf.mxu0
        %v1865 = vadd.f32 %v1545, %v1864
        %v1866 = vpop.f32.mrf.mxu0
        %v1867 = vpop.f32.mrf.mxu0
        %v1868 = vadd.f32 %v1545, %v1867
        %v1869 = vpop.f32.mrf.mxu0
        %1870 = vmatprep.mubr.bf16.mxu0 0
        %1871 = vmatmul.mubr.bf16.gmra.mxu0 %v1498
        %v1872 = vpop.f32.mrf.mxu0
        %v1873 = vadd.f32 %v1545, %v1872
        %v1874 = vpop.f32.mrf.mxu0
        %v1875 = vpop.f32.mrf.mxu0
        %v1876 = vadd.f32 %v1545, %v1875
        %v1877 = vpop.f32.mrf.mxu0
        %1878 = vmatprep.mubr.bf16.mxu0 0
        %1879 = vmatmul.mubr.bf16.gmra.mxu0 %v1499
        %v1880 = vpop.f32.mrf.mxu0
        %v1881 = vadd.f32 %v1545, %v1880
        %v1882 = vpop.f32.mrf.mxu0
        %v1883 = vpop.f32.mrf.mxu0
        %v1884 = vadd.f32 %v1545, %v1883
        %v1885 = vpop.f32.mrf.mxu0
        %1886 = vdwg.mxu0
        %v1887 = vpack.c.bf16 %v1477, %v1476
        %v1888 = vpack.c.bf16 %v1479, %v1478
        %v1889 = vpack.c.bf16 %v1481, %v1480
        %v1890 = vpack.c.bf16 %v1483, %v1482
        %v1891 = vpack.c.bf16 %v1485, %v1484
        %v1892 = vpack.c.bf16 %v1487, %v1486
        %v1893 = vpack.c.bf16 %v1489, %v1488
        %v1894 = vpack.c.bf16 %v1491, %v1490
        %v1895 = vld [vmem:[%s6] sm:$0xff]
        %v1896 = vld [vmem:[%s6 + $0x8] sm:$0xf]
        %v1897 = vld [vmem:[%s6 + $0xc] sm:$0xff]
        %v1898 = vld [vmem:[%s6 + $0x14] sm:$0xf]
        %v1899 = vld [vmem:[%s6 + $0x18] sm:$0xff]
        %v1900 = vld [vmem:[%s6 + $0x20] sm:$0xf]
        %v1901 = vld [vmem:[%s6 + $0x24] sm:$0xff]
        %v1902 = vld [vmem:[%s6 + $0x2c] sm:$0xf]
        %v1903 = vld [vmem:[%s6 + $0x30] sm:$0xff]
        %v1904 = vld [vmem:[%s6 + $0x38] sm:$0xf]
        %v1905 = vld [vmem:[%s6 + $0x3c] sm:$0xff]
        %v1906 = vld [vmem:[%s6 + $0x44] sm:$0xf]
        %v1907 = vld [vmem:[%s6 + $0x48] sm:$0xff]
        %v1908 = vld [vmem:[%s6 + $0x50] sm:$0xf]
        %v1909 = vld [vmem:[%s6 + $0x54] sm:$0xff]
        %v1910 = vld [vmem:[%s6 + $0x5c] sm:$0xf]
        %v1911 = vld [vmem:[%s6 + $0x60] sm:$0xff]
        %v1912 = vld [vmem:[%s6 + $0x68] sm:$0xf]
        %v1913 = vld [vmem:[%s6 + $0x6c] sm:$0xff]
        %v1914 = vld [vmem:[%s6 + $0x74] sm:$0xf]
        %v1915 = vld [vmem:[%s6 + $0x78] sm:$0xff]
        %v1916 = vld [vmem:[%s6 + $0x80] sm:$0xf]
        %v1917 = vld [vmem:[%s6 + $0x84] sm:$0xff]
        %v1918 = vld [vmem:[%s6 + $0x8c] sm:$0xf]
        %v1919 = vld [vmem:[%s6 + $0x90] sm:$0xff]
        %v1920 = vld [vmem:[%s6 + $0x98] sm:$0xf]
        %v1921 = vld [vmem:[%s6 + $0x9c] sm:$0xff]
        %v1922 = vld [vmem:[%s6 + $0xa4] sm:$0xf]
        %v1923 = vld [vmem:[%s6 + $0xa8] sm:$0xff]
        %v1924 = vld [vmem:[%s6 + $0xb0] sm:$0xf]
        %v1925 = vld [vmem:[%s6 + $0xb4] sm:$0xff]
        %v1926 = vld [vmem:[%s6 + $0xbc] sm:$0xf]
        %v1959 = vunpack.c.l.b16 %v1895
        %v1960 = vunpack.c.h.b16 %v1895
        %v1961 = vunpack.c.l.b16 %v1896
        %v1962 = vunpack.c.l.b16 %v1897
        %v1963 = vunpack.c.h.b16 %v1897
        %v1964 = vunpack.c.l.b16 %v1898
        %v1965 = vunpack.c.l.b16 %v1899
        %v1966 = vunpack.c.h.b16 %v1899
        %v1967 = vunpack.c.l.b16 %v1900
        %v1968 = vunpack.c.l.b16 %v1901
        %v1969 = vunpack.c.h.b16 %v1901
        %v1970 = vunpack.c.l.b16 %v1902
        %v1971 = vunpack.c.l.b16 %v1903
        %v1972 = vunpack.c.h.b16 %v1903
        %v1973 = vunpack.c.l.b16 %v1904
        %v1974 = vunpack.c.l.b16 %v1905
        %v1975 = vunpack.c.h.b16 %v1905
        %v1976 = vunpack.c.l.b16 %v1906
        %v1977 = vunpack.c.l.b16 %v1907
        %v1978 = vunpack.c.h.b16 %v1907
        %v1979 = vunpack.c.l.b16 %v1908
        %v1980 = vunpack.c.l.b16 %v1909
        %v1981 = vunpack.c.h.b16 %v1909
        %v1982 = vunpack.c.l.b16 %v1910
        %v1983 = vunpack.c.l.b16 %v1911
        %v1984 = vunpack.c.h.b16 %v1911
        %v1985 = vunpack.c.l.b16 %v1912
        %v1986 = vunpack.c.l.b16 %v1913
        %v1987 = vunpack.c.h.b16 %v1913
        %v1988 = vunpack.c.l.b16 %v1914
        %v1989 = vunpack.c.l.b16 %v1915
        %v1990 = vunpack.c.h.b16 %v1915
        %v1991 = vunpack.c.l.b16 %v1916
        %v1992 = vunpack.c.l.b16 %v1917
        %v1993 = vunpack.c.h.b16 %v1917
        %v1994 = vunpack.c.l.b16 %v1918
        %v1995 = vunpack.c.l.b16 %v1919
        %v1996 = vunpack.c.h.b16 %v1919
        %v1997 = vunpack.c.l.b16 %v1920
        %v1998 = vunpack.c.l.b16 %v1921
        %v1999 = vunpack.c.h.b16 %v1921
        %v2000 = vunpack.c.l.b16 %v1922
        %v2001 = vunpack.c.l.b16 %v1923
        %v2002 = vunpack.c.h.b16 %v1923
        %v2003 = vunpack.c.l.b16 %v1924
        %v2004 = vunpack.c.l.b16 %v1925
        %v2005 = vunpack.c.h.b16 %v1925
        %v2006 = vunpack.c.l.b16 %v1926
        %v2007 = vpack.c.b16 %v1962, %v1959
        %v2008 = vpack.c.b16 %v1963, %v1960
        %v2009 = vpack.c.b16 %v1964, %v1961
        %v2010 = vpack.c.b16 %v1968, %v1965
        %v2011 = vpack.c.b16 %v1969, %v1966
        %v2012 = vpack.c.b16 %v1970, %v1967
        %v2013 = vpack.c.b16 %v1974, %v1971
        %v2014 = vpack.c.b16 %v1975, %v1972
        %v2015 = vpack.c.b16 %v1976, %v1973
        %v2016 = vpack.c.b16 %v1980, %v1977
        %v2017 = vpack.c.b16 %v1981, %v1978
        %v2018 = vpack.c.b16 %v1982, %v1979
        %v2019 = vpack.c.b16 %v1986, %v1983
        %v2020 = vpack.c.b16 %v1987, %v1984
        %v2021 = vpack.c.b16 %v1988, %v1985
        %v2022 = vpack.c.b16 %v1992, %v1989
        %v2023 = vpack.c.b16 %v1993, %v1990
        %v2024 = vpack.c.b16 %v1994, %v1991
        %v2025 = vpack.c.b16 %v1998, %v1995
        %v2026 = vpack.c.b16 %v1999, %v1996
        %v2027 = vpack.c.b16 %v2000, %v1997
        %v2028 = vpack.c.b16 %v2004, %v2001
        %v2029 = vpack.c.b16 %v2005, %v2002
        %v2030 = vpack.c.b16 %v2006, %v2003
        %2055 = vmatprep.subr.bf16.mxu0 %v2029
        %2056 = vmatpush1.bf16.msra.mxu0 %v2028
        %2057 = vmatprep.subr.bf16.mxu0 %v2026
        %2058 = vmatpush1.bf16.msra.mxu0 %v2025
        %2059 = vmatprep.subr.bf16.mxu0 %v2023
        %2060 = vmatpush1.bf16.msra.mxu0 %v2022
        %2061 = vmatprep.subr.bf16.mxu0 %v2020
        %2062 = vmatpush1.bf16.msra.mxu0 %v2019
        %2063 = vmatprep.subr.bf16.mxu0 %v2017
        %2064 = vmatpush1.bf16.msra.mxu0 %v2016
        %2065 = vmatprep.subr.bf16.mxu0 %v2014
        %2066 = vmatpush1.bf16.msra.mxu0 %v2013
        %2067 = vmatprep.subr.bf16.mxu0 %v2011
        %2068 = vmatpush1.bf16.msra.mxu0 %v2010
        %2069 = vmatprep.subr.bf16.mxu0 %v2008
        %2070 = vmatpush1.bf16.msra.mxu0 %v2007
        %2071 = vmatprep.subr.bf16.mxu0 0
        %2072 = vmatpush2.bf16.msra.mxu0 0
        %2073 = vmatprep.subr.bf16.mxu0 0
        %2074 = vmatpush2.bf16.msra.mxu0 0
        %2075 = vmatprep.subr.bf16.mxu0 0
        %2076 = vmatpush2.bf16.msra.mxu0 0
        %2077 = vmatprep.subr.bf16.mxu0 0
        %2078 = vmatpush2.bf16.msra.mxu0 0
        %2079 = vmatprep.subr.bf16.mxu0 0
        %2080 = vmatpush2.bf16.msra.mxu0 0
        %2081 = vmatprep.subr.bf16.mxu0 0
        %2082 = vmatpush2.bf16.msra.mxu0 0
        %2083 = vmatprep.subr.bf16.mxu0 0
        %2084 = vmatpush2.bf16.msra.mxu0 0
        %2085 = vmatprep.subr.bf16.mxu0 0
        %2086 = vmatpush2.bf16.msra.mxu0 0
        %2087 = vmatprep.mubr.bf16.mxu0 0
        %2088 = vmatmul.mubr.bf16.gmra.mxu0 %v1887
        %v2089 = vpop.f32.mrf.mxu0
        %v2090 = vadd.f32 0.0, %v2089
        %v2091 = vpop.f32.mrf.mxu0
        %v2092 = vadd.f32 0.0, %v2091
        %v2093 = vpop.f32.mrf.mxu0
        %v2094 = vadd.f32 0.0, %v2093
        %v2095 = vpop.f32.mrf.mxu0
        %v2096 = vadd.f32 0.0, %v2095
        %2097 = vmatprep.mubr.bf16.mxu0 0
        %2098 = vmatmul.mubr.bf16.gmra.mxu0 %v1888
        %v2099 = vpop.f32.mrf.mxu0
        %v2100 = vadd.f32 0.0, %v2099
        %v2101 = vpop.f32.mrf.mxu0
        %v2102 = vadd.f32 0.0, %v2101
        %v2103 = vpop.f32.mrf.mxu0
        %v2104 = vadd.f32 0.0, %v2103
        %v2105 = vpop.f32.mrf.mxu0
        %v2106 = vadd.f32 0.0, %v2105
        %2107 = vmatprep.mubr.bf16.mxu0 0
        %2108 = vmatmul.mubr.bf16.gmra.mxu0 %v1889
        %v2109 = vpop.f32.mrf.mxu0
        %v2110 = vadd.f32 0.0, %v2109
        %v2111 = vpop.f32.mrf.mxu0
        %v2112 = vadd.f32 0.0, %v2111
        %v2113 = vpop.f32.mrf.mxu0
        %v2114 = vadd.f32 0.0, %v2113
        %v2115 = vpop.f32.mrf.mxu0
        %v2116 = vadd.f32 0.0, %v2115
        %2117 = vmatprep.mubr.bf16.mxu0 0
        %2118 = vmatmul.mubr.bf16.gmra.mxu0 %v1890
        %v2119 = vpop.f32.mrf.mxu0
        %v2120 = vadd.f32 0.0, %v2119
        %v2121 = vpop.f32.mrf.mxu0
        %v2122 = vadd.f32 0.0, %v2121
        %v2123 = vpop.f32.mrf.mxu0
        %v2124 = vadd.f32 0.0, %v2123
        %v2125 = vpop.f32.mrf.mxu0
        %v2126 = vadd.f32 0.0, %v2125
        %2127 = vmatprep.mubr.bf16.mxu0 0
        %2128 = vmatmul.mubr.bf16.gmra.mxu0 %v1891
        %v2129 = vpop.f32.mrf.mxu0
        %v2130 = vadd.f32 0.0, %v2129
        %v2131 = vpop.f32.mrf.mxu0
        %v2132 = vadd.f32 0.0, %v2131
        %v2133 = vpop.f32.mrf.mxu0
        %v2134 = vadd.f32 0.0, %v2133
        %v2135 = vpop.f32.mrf.mxu0
        %v2136 = vadd.f32 0.0, %v2135
        %2137 = vmatprep.mubr.bf16.mxu0 0
        %2138 = vmatmul.mubr.bf16.gmra.mxu0 %v1892
        %v2139 = vpop.f32.mrf.mxu0
        %v2140 = vadd.f32 0.0, %v2139
        %v2141 = vpop.f32.mrf.mxu0
        %v2142 = vadd.f32 0.0, %v2141
        %v2143 = vpop.f32.mrf.mxu0
        %v2144 = vadd.f32 0.0, %v2143
        %v2145 = vpop.f32.mrf.mxu0
        %v2146 = vadd.f32 0.0, %v2145
        %2147 = vmatprep.mubr.bf16.mxu0 0
        %2148 = vmatmul.mubr.bf16.gmra.mxu0 %v1893
        %v2149 = vpop.f32.mrf.mxu0
        %v2150 = vadd.f32 0.0, %v2149
        %v2151 = vpop.f32.mrf.mxu0
        %v2152 = vadd.f32 0.0, %v2151
        %v2153 = vpop.f32.mrf.mxu0
        %v2154 = vadd.f32 0.0, %v2153
        %v2155 = vpop.f32.mrf.mxu0
        %v2156 = vadd.f32 0.0, %v2155
        %2157 = vmatprep.mubr.bf16.mxu0 0
        %2158 = vmatmul.mubr.bf16.gmra.mxu0 %v1894
        %v2159 = vpop.f32.mrf.mxu0
        %v2160 = vadd.f32 0.0, %v2159
        %v2161 = vpop.f32.mrf.mxu0
        %v2162 = vadd.f32 0.0, %v2161
        %v2163 = vpop.f32.mrf.mxu0
        %v2164 = vadd.f32 0.0, %v2163
        %v2165 = vpop.f32.mrf.mxu0
        %v2166 = vadd.f32 0.0, %v2165
        %2167 = vdwg.mxu0
        %2168 = vmatprep.subr.bf16.mxu0 0
        %2169 = vmatpush1.bf16.msra.mxu0 %v2030
        %2170 = vmatprep.subr.bf16.mxu0 0
        %2171 = vmatpush1.bf16.msra.mxu0 %v2027
        %2172 = vmatprep.subr.bf16.mxu0 0
        %2173 = vmatpush1.bf16.msra.mxu0 %v2024
        %2174 = vmatprep.subr.bf16.mxu0 0
        %2175 = vmatpush1.bf16.msra.mxu0 %v2021
        %2176 = vmatprep.subr.bf16.mxu0 0
        %2177 = vmatpush1.bf16.msra.mxu0 %v2018
        %2178 = vmatprep.subr.bf16.mxu0 0
        %2179 = vmatpush1.bf16.msra.mxu0 %v2015
        %2180 = vmatprep.subr.bf16.mxu0 0
        %2181 = vmatpush1.bf16.msra.mxu0 %v2012
        %2182 = vmatprep.subr.bf16.mxu0 0
        %2183 = vmatpush1.bf16.msra.mxu0 %v2009
        %2184 = vmatprep.subr.bf16.mxu0 0
        %2185 = vmatpush2.bf16.msra.mxu0 0
        %2186 = vmatprep.subr.bf16.mxu0 0
        %2187 = vmatpush2.bf16.msra.mxu0 0
        %2188 = vmatprep.subr.bf16.mxu0 0
        %2189 = vmatpush2.bf16.msra.mxu0 0
        %2190 = vmatprep.subr.bf16.mxu0 0
        %2191 = vmatpush2.bf16.msra.mxu0 0
        %2192 = vmatprep.subr.bf16.mxu0 0
        %2193 = vmatpush2.bf16.msra.mxu0 0
        %2194 = vmatprep.subr.bf16.mxu0 0
        %2195 = vmatpush2.bf16.msra.mxu0 0
        %2196 = vmatprep.subr.bf16.mxu0 0
        %2197 = vmatpush2.bf16.msra.mxu0 0
        %2198 = vmatprep.subr.bf16.mxu0 0
        %2199 = vmatpush2.bf16.msra.mxu0 0
        %2200 = vmatprep.mubr.bf16.mxu0 0
        %2201 = vmatmul.mubr.bf16.gmra.mxu0 %v1887
        %v2202 = vpop.f32.mrf.mxu0
        %v2203 = vadd.f32 0.0, %v2202
        %v2204 = vpop.f32.mrf.mxu0
        %v2205 = vpop.f32.mrf.mxu0
        %v2206 = vadd.f32 0.0, %v2205
        %v2207 = vpop.f32.mrf.mxu0
        %2208 = vmatprep.mubr.bf16.mxu0 0
        %2209 = vmatmul.mubr.bf16.gmra.mxu0 %v1888
        %v2210 = vpop.f32.mrf.mxu0
        %v2211 = vadd.f32 0.0, %v2210
        %v2212 = vpop.f32.mrf.mxu0
        %v2213 = vpop.f32.mrf.mxu0
        %v2214 = vadd.f32 0.0, %v2213
        %v2215 = vpop.f32.mrf.mxu0
        %2216 = vmatprep.mubr.bf16.mxu0 0
        %2217 = vmatmul.mubr.bf16.gmra.mxu0 %v1889
        %v2218 = vpop.f32.mrf.mxu0
        %v2219 = vadd.f32 0.0, %v2218
        %v2220 = vpop.f32.mrf.mxu0
        %v2221 = vpop.f32.mrf.mxu0
        %v2222 = vadd.f32 0.0, %v2221
        %v2223 = vpop.f32.mrf.mxu0
        %2224 = vmatprep.mubr.bf16.mxu0 0
        %2225 = vmatmul.mubr.bf16.gmra.mxu0 %v1890
        %v2226 = vpop.f32.mrf.mxu0
        %v2227 = vadd.f32 0.0, %v2226
        %v2228 = vpop.f32.mrf.mxu0
        %v2229 = vpop.f32.mrf.mxu0
        %v2230 = vadd.f32 0.0, %v2229
        %v2231 = vpop.f32.mrf.mxu0
        %2232 = vmatprep.mubr.bf16.mxu0 0
        %2233 = vmatmul.mubr.bf16.gmra.mxu0 %v1891
        %v2234 = vpop.f32.mrf.mxu0
        %v2235 = vadd.f32 0.0, %v2234
        %v2236 = vpop.f32.mrf.mxu0
        %v2237 = vpop.f32.mrf.mxu0
        %v2238 = vadd.f32 0.0, %v2237
        %v2239 = vpop.f32.mrf.mxu0
        %2240 = vmatprep.mubr.bf16.mxu0 0
        %2241 = vmatmul.mubr.bf16.gmra.mxu0 %v1892
        %v2242 = vpop.f32.mrf.mxu0
        %v2243 = vadd.f32 0.0, %v2242
        %v2244 = vpop.f32.mrf.mxu0
        %v2245 = vpop.f32.mrf.mxu0
        %v2246 = vadd.f32 0.0, %v2245
        %v2247 = vpop.f32.mrf.mxu0
        %2248 = vmatprep.mubr.bf16.mxu0 0
        %2249 = vmatmul.mubr.bf16.gmra.mxu0 %v1893
        %v2250 = vpop.f32.mrf.mxu0
        %v2251 = vadd.f32 0.0, %v2250
        %v2252 = vpop.f32.mrf.mxu0
        %v2253 = vpop.f32.mrf.mxu0
        %v2254 = vadd.f32 0.0, %v2253
        %v2255 = vpop.f32.mrf.mxu0
        %2256 = vmatprep.mubr.bf16.mxu0 0
        %2257 = vmatmul.mubr.bf16.gmra.mxu0 %v1894
        %v2258 = vpop.f32.mrf.mxu0
        %v2259 = vadd.f32 0.0, %v2258
        %v2260 = vpop.f32.mrf.mxu0
        %v2261 = vpop.f32.mrf.mxu0
        %v2262 = vadd.f32 0.0, %v2261
        %v2263 = vpop.f32.mrf.mxu0
        %2264 = vdwg.mxu0
        %v2265 = vadd.f32 %v1712, %v2090
        %v2266 = vadd.f32 %v1714, %v2092
        %v2267 = vadd.f32 %v1716, %v2094
        %v2268 = vadd.f32 %v1718, %v2096
        %v2269 = vadd.f32 %v1722, %v2100
        %v2270 = vadd.f32 %v1724, %v2102
        %v2271 = vadd.f32 %v1726, %v2104
        %v2272 = vadd.f32 %v1728, %v2106
        %v2273 = vadd.f32 %v1732, %v2110
        %v2274 = vadd.f32 %v1734, %v2112
        %v2275 = vadd.f32 %v1736, %v2114
        %v2276 = vadd.f32 %v1738, %v2116
        %v2277 = vadd.f32 %v1742, %v2120
        %v2278 = vadd.f32 %v1744, %v2122
        %v2279 = vadd.f32 %v1746, %v2124
        %v2280 = vadd.f32 %v1748, %v2126
        %v2281 = vadd.f32 %v1752, %v2130
        %v2282 = vadd.f32 %v1754, %v2132
        %v2283 = vadd.f32 %v1756, %v2134
        %v2284 = vadd.f32 %v1758, %v2136
        %v2285 = vadd.f32 %v1762, %v2140
        %v2286 = vadd.f32 %v1764, %v2142
        %v2287 = vadd.f32 %v1766, %v2144
        %v2288 = vadd.f32 %v1768, %v2146
        %v2289 = vadd.f32 %v1772, %v2150
        %v2290 = vadd.f32 %v1774, %v2152
        %v2291 = vadd.f32 %v1776, %v2154
        %v2292 = vadd.f32 %v1778, %v2156
        %v2293 = vadd.f32 %v1782, %v2160
        %v2294 = vadd.f32 %v1784, %v2162
        %v2295 = vadd.f32 %v1786, %v2164
        %v2296 = vadd.f32 %v1788, %v2166
        %v2297 = vxor.u32 %v2265, 2147483648
        %v2298 = vxor.u32 %v2266, 2147483648
        %v2299 = vxor.u32 %v2267, 2147483648
        %v2300 = vxor.u32 %v2268, 2147483648
        %v2301 = vxor.u32 %v2269, 2147483648
        %v2302 = vxor.u32 %v2270, 2147483648
        %v2303 = vxor.u32 %v2271, 2147483648
        %v2304 = vxor.u32 %v2272, 2147483648
        %v2305 = vxor.u32 %v2273, 2147483648
        %v2306 = vxor.u32 %v2274, 2147483648
        %v2307 = vxor.u32 %v2275, 2147483648
        %v2308 = vxor.u32 %v2276, 2147483648
        %v2309 = vxor.u32 %v2277, 2147483648
        %v2310 = vxor.u32 %v2278, 2147483648
        %v2311 = vxor.u32 %v2279, 2147483648
        %v2312 = vxor.u32 %v2280, 2147483648
        %v2313 = vxor.u32 %v2281, 2147483648
        %v2314 = vxor.u32 %v2282, 2147483648
        %v2315 = vxor.u32 %v2283, 2147483648
        %v2316 = vxor.u32 %v2284, 2147483648
        %v2317 = vxor.u32 %v2285, 2147483648
        %v2318 = vxor.u32 %v2286, 2147483648
        %v2319 = vxor.u32 %v2287, 2147483648
        %v2320 = vxor.u32 %v2288, 2147483648
        %v2321 = vxor.u32 %v2289, 2147483648
        %v2322 = vxor.u32 %v2290, 2147483648
        %v2323 = vxor.u32 %v2291, 2147483648
        %v2324 = vxor.u32 %v2292, 2147483648
        %v2325 = vxor.u32 %v2293, 2147483648
        %v2326 = vxor.u32 %v2294, 2147483648
        %v2327 = vxor.u32 %v2295, 2147483648
        %v2328 = vxor.u32 %v2296, 2147483648
        %v2329 = vmul.f32 %v2297, 1.442695
        %v2330 = vpow.pop %v2329
        %v2331 = vmul.f32 %v2298, 1.442695
        %v2332 = vpow.pop %v2331
        %v2333 = vmul.f32 %v2299, 1.442695
        %v2334 = vpow.pop %v2333
        %v2335 = vmul.f32 %v2300, 1.442695
        %v2336 = vpow.pop %v2335
        %v2337 = vmul.f32 %v2301, 1.442695
        %v2338 = vpow.pop %v2337
        %v2339 = vmul.f32 %v2302, 1.442695
        %v2340 = vpow.pop %v2339
        %v2341 = vmul.f32 %v2303, 1.442695
        %v2342 = vpow.pop %v2341
        %v2343 = vmul.f32 %v2304, 1.442695
        %v2344 = vpow.pop %v2343
        %v2345 = vmul.f32 %v2305, 1.442695
        %v2346 = vpow.pop %v2345
        %v2347 = vmul.f32 %v2306, 1.442695
        %v2348 = vpow.pop %v2347
        %v2349 = vmul.f32 %v2307, 1.442695
        %v2350 = vpow.pop %v2349
        %v2351 = vmul.f32 %v2308, 1.442695
        %v2352 = vpow.pop %v2351
        %v2353 = vmul.f32 %v2309, 1.442695
        %v2354 = vpow.pop %v2353
        %v2355 = vmul.f32 %v2310, 1.442695
        %v2356 = vpow.pop %v2355
        %v2357 = vmul.f32 %v2311, 1.442695
        %v2358 = vpow.pop %v2357
        %v2359 = vmul.f32 %v2312, 1.442695
        %v2360 = vpow.pop %v2359
        %v2361 = vmul.f32 %v2313, 1.442695
        %v2362 = vpow.pop %v2361
        %v2363 = vmul.f32 %v2314, 1.442695
        %v2364 = vpow.pop %v2363
        %v2365 = vmul.f32 %v2315, 1.442695
        %v2366 = vpow.pop %v2365
        %v2367 = vmul.f32 %v2316, 1.442695
        %v2368 = vpow.pop %v2367
        %v2369 = vmul.f32 %v2317, 1.442695
        %v2370 = vpow.pop %v2369
        %v2371 = vmul.f32 %v2318, 1.442695
        %v2372 = vpow.pop %v2371
        %v2373 = vmul.f32 %v2319, 1.442695
        %v2374 = vpow.pop %v2373
        %v2375 = vmul.f32 %v2320, 1.442695
        %v2376 = vpow.pop %v2375
        %v2377 = vmul.f32 %v2321, 1.442695
        %v2378 = vpow.pop %v2377
        %v2379 = vmul.f32 %v2322, 1.442695
        %v2380 = vpow.pop %v2379
        %v2381 = vmul.f32 %v2323, 1.442695
        %v2382 = vpow.pop %v2381
        %v2383 = vmul.f32 %v2324, 1.442695
        %v2384 = vpow.pop %v2383
        %v2385 = vmul.f32 %v2325, 1.442695
        %v2386 = vpow.pop %v2385
        %v2387 = vmul.f32 %v2326, 1.442695
        %v2388 = vpow.pop %v2387
        %v2389 = vmul.f32 %v2327, 1.442695
        %v2390 = vpow.pop %v2389
        %v2391 = vmul.f32 %v2328, 1.442695
        %v2392 = vpow.pop %v2391
        %v2393 = vadd.f32 %v2330, 1.0
        %v2394 = vadd.f32 %v2332, 1.0
        %v2395 = vadd.f32 %v2334, 1.0
        %v2396 = vadd.f32 %v2336, 1.0
        %v2397 = vadd.f32 %v2338, 1.0
        %v2398 = vadd.f32 %v2340, 1.0
        %v2399 = vadd.f32 %v2342, 1.0
        %v2400 = vadd.f32 %v2344, 1.0
        %v2401 = vadd.f32 %v2346, 1.0
        %v2402 = vadd.f32 %v2348, 1.0
        %v2403 = vadd.f32 %v2350, 1.0
        %v2404 = vadd.f32 %v2352, 1.0
        %v2405 = vadd.f32 %v2354, 1.0
        %v2406 = vadd.f32 %v2356, 1.0
        %v2407 = vadd.f32 %v2358, 1.0
        %v2408 = vadd.f32 %v2360, 1.0
        %v2409 = vadd.f32 %v2362, 1.0
        %v2410 = vadd.f32 %v2364, 1.0
        %v2411 = vadd.f32 %v2366, 1.0
        %v2412 = vadd.f32 %v2368, 1.0
        %v2413 = vadd.f32 %v2370, 1.0
        %v2414 = vadd.f32 %v2372, 1.0
        %v2415 = vadd.f32 %v2374, 1.0
        %v2416 = vadd.f32 %v2376, 1.0
        %v2417 = vadd.f32 %v2378, 1.0
        %v2418 = vadd.f32 %v2380, 1.0
        %v2419 = vadd.f32 %v2382, 1.0
        %v2420 = vadd.f32 %v2384, 1.0
        %v2421 = vadd.f32 %v2386, 1.0
        %v2422 = vadd.f32 %v2388, 1.0
        %v2423 = vadd.f32 %v2390, 1.0
        %v2424 = vadd.f32 %v2392, 1.0
        %v2425 = vrcp.pop %v2393
        %v2426 = vmul.f32 1.0, %v2425
        %v2427 = vrcp.pop %v2394
        %v2428 = vmul.f32 1.0, %v2427
        %v2429 = vrcp.pop %v2395
        %v2430 = vmul.f32 1.0, %v2429
        %v2431 = vrcp.pop %v2396
        %v2432 = vmul.f32 1.0, %v2431
        %v2433 = vrcp.pop %v2397
        %v2434 = vmul.f32 1.0, %v2433
        %v2435 = vrcp.pop %v2398
        %v2436 = vmul.f32 1.0, %v2435
        %v2437 = vrcp.pop %v2399
        %v2438 = vmul.f32 1.0, %v2437
        %v2439 = vrcp.pop %v2400
        %v2440 = vmul.f32 1.0, %v2439
        %v2441 = vrcp.pop %v2401
        %v2442 = vmul.f32 1.0, %v2441
        %v2443 = vrcp.pop %v2402
        %v2444 = vmul.f32 1.0, %v2443
        %v2445 = vrcp.pop %v2403
        %v2446 = vmul.f32 1.0, %v2445
        %v2447 = vrcp.pop %v2404
        %v2448 = vmul.f32 1.0, %v2447
        %v2449 = vrcp.pop %v2405
        %v2450 = vmul.f32 1.0, %v2449
        %v2451 = vrcp.pop %v2406
        %v2452 = vmul.f32 1.0, %v2451
        %v2453 = vrcp.pop %v2407
        %v2454 = vmul.f32 1.0, %v2453
        %v2455 = vrcp.pop %v2408
        %v2456 = vmul.f32 1.0, %v2455
        %v2457 = vrcp.pop %v2409
        %v2458 = vmul.f32 1.0, %v2457
        %v2459 = vrcp.pop %v2410
        %v2460 = vmul.f32 1.0, %v2459
        %v2461 = vrcp.pop %v2411
        %v2462 = vmul.f32 1.0, %v2461
        %v2463 = vrcp.pop %v2412
        %v2464 = vmul.f32 1.0, %v2463
        %v2465 = vrcp.pop %v2413
        %v2466 = vmul.f32 1.0, %v2465
        %v2467 = vrcp.pop %v2414
        %v2468 = vmul.f32 1.0, %v2467
        %v2469 = vrcp.pop %v2415
        %v2470 = vmul.f32 1.0, %v2469
        %v2471 = vrcp.pop %v2416
        %v2472 = vmul.f32 1.0, %v2471
        %v2473 = vrcp.pop %v2417
        %v2474 = vmul.f32 1.0, %v2473
        %v2475 = vrcp.pop %v2418
        %v2476 = vmul.f32 1.0, %v2475
        %v2477 = vrcp.pop %v2419
        %v2478 = vmul.f32 1.0, %v2477
        %v2479 = vrcp.pop %v2420
        %v2480 = vmul.f32 1.0, %v2479
        %v2481 = vrcp.pop %v2421
        %v2482 = vmul.f32 1.0, %v2481
        %v2483 = vrcp.pop %v2422
        %v2484 = vmul.f32 1.0, %v2483
        %v2485 = vrcp.pop %v2423
        %v2486 = vmul.f32 1.0, %v2485
        %v2487 = vrcp.pop %v2424
        %v2488 = vmul.f32 1.0, %v2487
        %v2489 = vld [vmem:[%s8] sm:$0x1]
        %v2491 = vlaneseq
        %v2492 = vshrl.u32 %v2491, 7
        %v2493 = vsub.s32 0, %v2492
        %v2494 = vrot.slane %v2489, %v2493
        %v2496 = vadd.f32 %v2203, %v2494
        %v2497 = vadd.f32 %v2206, %v2494
        %v2498 = vadd.f32 %v2211, %v2494
        %v2499 = vadd.f32 %v2214, %v2494
        %v2500 = vadd.f32 %v2219, %v2494
        %v2501 = vadd.f32 %v2222, %v2494
        %v2502 = vadd.f32 %v2227, %v2494
        %v2503 = vadd.f32 %v2230, %v2494
        %v2504 = vadd.f32 %v2235, %v2494
        %v2505 = vadd.f32 %v2238, %v2494
        %v2506 = vadd.f32 %v2243, %v2494
        %v2507 = vadd.f32 %v2246, %v2494
        %v2508 = vadd.f32 %v2251, %v2494
        %v2509 = vadd.f32 %v2254, %v2494
        %v2510 = vadd.f32 %v2259, %v2494
        %v2511 = vadd.f32 %v2262, %v2494
        %v2512 = vmul.f32 %v2426, %v2496
        %v2513 = vmul.f32 %v2430, %v2497
        %v2514 = vmul.f32 %v2434, %v2498
        %v2515 = vmul.f32 %v2438, %v2499
        %v2516 = vmul.f32 %v2442, %v2500
        %v2517 = vmul.f32 %v2446, %v2501
        %v2518 = vmul.f32 %v2450, %v2502
        %v2519 = vmul.f32 %v2454, %v2503
        %v2520 = vmul.f32 %v2458, %v2504
        %v2521 = vmul.f32 %v2462, %v2505
        %v2522 = vmul.f32 %v2466, %v2506
        %v2523 = vmul.f32 %v2470, %v2507
        %v2524 = vmul.f32 %v2474, %v2508
        %v2525 = vmul.f32 %v2478, %v2509
        %v2526 = vmul.f32 %v2482, %v2510
        %v2527 = vmul.f32 %v2486, %v2511
        %v2528 = vadd.f32 %v1825, %v2512
        %v2529 = vadd.f32 %v1828, %v2513
        %v2530 = vadd.f32 %v1833, %v2514
        %v2531 = vadd.f32 %v1836, %v2515
        %v2532 = vadd.f32 %v1841, %v2516
        %v2533 = vadd.f32 %v1844, %v2517
        %v2534 = vadd.f32 %v1849, %v2518
        %v2535 = vadd.f32 %v1852, %v2519
        %v2536 = vadd.f32 %v1857, %v2520
        %v2537 = vadd.f32 %v1860, %v2521
        %v2538 = vadd.f32 %v1865, %v2522
        %v2539 = vadd.f32 %v1868, %v2523
        %v2540 = vadd.f32 %v1873, %v2524
        %v2541 = vadd.f32 %v1876, %v2525
        %v2542 = vadd.f32 %v1881, %v2526
        %v2543 = vadd.f32 %v1884, %v2527
        %v2544 = vtanh.pop %v2528
        %v2545 = vtanh.pop %v2529
        %v2546 = vtanh.pop %v2530
        %v2547 = vtanh.pop %v2531
        %v2548 = vtanh.pop %v2532
        %v2549 = vtanh.pop %v2533
        %v2550 = vtanh.pop %v2534
        %v2551 = vtanh.pop %v2535
        %v2552 = vtanh.pop %v2536
        %v2553 = vtanh.pop %v2537
        %v2554 = vtanh.pop %v2538
        %v2555 = vtanh.pop %v2539
        %v2556 = vtanh.pop %v2540
        %v2557 = vtanh.pop %v2541
        %v2558 = vtanh.pop %v2542
        %v2559 = vtanh.pop %v2543
        %v2560 = vsub.f32 1.0, %v2428
        %v2561 = vsub.f32 1.0, %v2432
        %v2562 = vsub.f32 1.0, %v2436
        %v2563 = vsub.f32 1.0, %v2440
        %v2564 = vsub.f32 1.0, %v2444
        %v2565 = vsub.f32 1.0, %v2448
        %v2566 = vsub.f32 1.0, %v2452
        %v2567 = vsub.f32 1.0, %v2456
        %v2568 = vsub.f32 1.0, %v2460
        %v2569 = vsub.f32 1.0, %v2464
        %v2570 = vsub.f32 1.0, %v2468
        %v2571 = vsub.f32 1.0, %v2472
        %v2572 = vsub.f32 1.0, %v2476
        %v2573 = vsub.f32 1.0, %v2480
        %v2574 = vsub.f32 1.0, %v2484
        %v2575 = vsub.f32 1.0, %v2488
        %v2576 = vmul.f32 %v2560, %v2544
        %v2577 = vmul.f32 %v2561, %v2545
        %v2578 = vmul.f32 %v2562, %v2546
        %v2579 = vmul.f32 %v2563, %v2547
        %v2580 = vmul.f32 %v2564, %v2548
        %v2581 = vmul.f32 %v2565, %v2549
        %v2582 = vmul.f32 %v2566, %v2550
        %v2583 = vmul.f32 %v2567, %v2551
        %v2584 = vmul.f32 %v2568, %v2552
        %v2585 = vmul.f32 %v2569, %v2553
        %v2586 = vmul.f32 %v2570, %v2554
        %v2587 = vmul.f32 %v2571, %v2555
        %v2588 = vmul.f32 %v2572, %v2556
        %v2589 = vmul.f32 %v2573, %v2557
        %v2590 = vmul.f32 %v2574, %v2558
        %v2591 = vmul.f32 %v2575, %v2559
        %v2592 = vmul.f32 %v2428, %v1476
        %v2593 = vmul.f32 %v2432, %v1477
        %v2594 = vmul.f32 %v2436, %v1478
        %v2595 = vmul.f32 %v2440, %v1479
        %v2596 = vmul.f32 %v2444, %v1480
        %v2597 = vmul.f32 %v2448, %v1481
        %v2598 = vmul.f32 %v2452, %v1482
        %v2599 = vmul.f32 %v2456, %v1483
        %v2600 = vmul.f32 %v2460, %v1484
        %v2601 = vmul.f32 %v2464, %v1485
        %v2602 = vmul.f32 %v2468, %v1486
        %v2603 = vmul.f32 %v2472, %v1487
        %v2604 = vmul.f32 %v2476, %v1488
        %v2605 = vmul.f32 %v2480, %v1489
        %v2606 = vmul.f32 %v2484, %v1490
        %v2607 = vmul.f32 %v2488, %v1491
        %v2608 = vadd.f32 %v2576, %v2592
        %v2609 = vadd.f32 %v2577, %v2593
        %v2610 = vadd.f32 %v2578, %v2594
        %v2611 = vadd.f32 %v2579, %v2595
        %v2612 = vadd.f32 %v2580, %v2596
        %v2613 = vadd.f32 %v2581, %v2597
        %v2614 = vadd.f32 %v2582, %v2598
        %v2615 = vadd.f32 %v2583, %v2599
        %v2616 = vadd.f32 %v2584, %v2600
        %v2617 = vadd.f32 %v2585, %v2601
        %v2618 = vadd.f32 %v2586, %v2602
        %v2619 = vadd.f32 %v2587, %v2603
        %v2620 = vadd.f32 %v2588, %v2604
        %v2621 = vadd.f32 %v2589, %v2605
        %v2622 = vadd.f32 %v2590, %v2606
        %v2623 = vadd.f32 %v2591, %v2607
        %2624 = vst [vmem:[%s1475] sm:$0xff] %v2608
        %2625 = vst [vmem:[%s1475 + $0x8] sm:$0xff] %v2609
        %2626 = vst [vmem:[%s1475 + $0x10] sm:$0xff] %v2610
        %2627 = vst [vmem:[%s1475 + $0x18] sm:$0xff] %v2611
        %2628 = vst [vmem:[%s1475 + $0x20] sm:$0xff] %v2612
        %2629 = vst [vmem:[%s1475 + $0x28] sm:$0xff] %v2613
        %2630 = vst [vmem:[%s1475 + $0x30] sm:$0xff] %v2614
        %2631 = vst [vmem:[%s1475 + $0x38] sm:$0xff] %v2615
        %2632 = vst [vmem:[%s1475 + $0x40] sm:$0xff] %v2616
        %2633 = vst [vmem:[%s1475 + $0x48] sm:$0xff] %v2617
        %2634 = vst [vmem:[%s1475 + $0x50] sm:$0xff] %v2618
        %2635 = vst [vmem:[%s1475 + $0x58] sm:$0xff] %v2619
        %2636 = vst [vmem:[%s1475 + $0x60] sm:$0xff] %v2620
        %2637 = vst [vmem:[%s1475 + $0x68] sm:$0xff] %v2621
        %2638 = vst [vmem:[%s1475 + $0x70] sm:$0xff] %v2622
        %2639 = vst [vmem:[%s1475 + $0x78] sm:$0xff] %v2623
        // Predicated region
        $region61: #{encoder_forward.1} parent=55 // pred_check
          %p2640 = pneg %p247
        $region62: #{encoder_forward.1} parent=55 // pred_check_branch
          %2642 = sbr.rel (%p2640) target = $region64
        $region63: #{encoder_forward.1} parent=55 // pred_region
          %s2643 = smul.u32 16, %s25
          %s2645 = ssub.s32 4096, 4096
          %2646 = vsyncadd [#allocation3], %s2645
          %s2647 = smul.addr %s2643, 128
          %s2648 = scalar_lea.hbm %s9, %s2647
          %s2649 = sshll.u32 [#allocation2], 4
          %s2650 = int_to_ptr.vmem [resolvable:$true] %s2649
          %2655 = dma.vmem_to_hbm [thread:$0]  %s2650, 4096, %s2648, [#allocation3], 128, 128, 8
        $region64: #{encoder_forward.1} parent=55 // pred_fallthru
          _
        // Predicated region
        $region65: #{encoder_forward.1} parent=55 // pred_check
          %p2656 = pneg %p247
        $region66: #{encoder_forward.1} parent=55 // pred_check_branch
          %2658 = sbr.rel (%p2656) target = $region68
        $region67: #{encoder_forward.1} parent=55 // pred_region
          %2659 = dma.done [#allocation3], 4096
        $region68: #{encoder_forward.1} parent=55 // pred_fallthru
          _
      $region56: #{encoder_forward.1} parent=5 // pred_fallthru
        _
      %p2660 = scmp.le.s32.totalorder 2, %s16
      // Predicated region
      $region69: #{encoder_forward.1} parent=5 // pred_check
        %p2661 = pneg %p2660
      $region70: #{encoder_forward.1} parent=5 // pred_check_branch
        %2663 = sbr.rel (%p2661) target = $region72
      $region71: #{encoder_forward.1} parent=5 // pred_region
        %s2664 = ssub.s32 %s16, 2
      $region72: #{encoder_forward.1} parent=5 // pred_fallthru
        _
    $region6: #{encoder_forward.1} parent=1 // loop_footer
      %s20 = sadd.s32 1, %s16
    $region7: #{encoder_forward.1} parent=1 // loop_footer_branch
      %15 = sbr.rel target = $region3
    $region8: #{encoder_forward.1} parent=1 // loop_exit
      _
    %2665 = vsyncpa [#allocation3], 1
    %s2666 = scalar_lea.sflag [#allocation3], 1
    %2667 = vsyncpa %s2666, 1

</llo_original>
